<compile_context>
chip_gen: v6e
topology: v6e:2x2x1
jax: 0.10.0
libtpu: 0.0.40
codegen_flags: <defaults>
</compile_context>

<pallas_src>
import jax
import jax.numpy as jnp
from jax.experimental import pallas as pl
from jax.experimental.pallas import tpu as pltpu

# ---- model dims (small, synthetic) ------------------------------------------
D_IN = 256      # input features
D_H = 128       # hidden
D_Z = 64        # logical latent dim (as exposed by the module)
D_ZP = 128      # latent padded to a full lane width inside the kernel


def ae_kernel(x_ref,
              w1_ref, w2_ref, w3_ref, w4_ref,
              b_ref,
              out_ref):
    """Fused encoder+decoder forward for one batch tile; weights VMEM-resident."""
    x = x_ref[...].astype(jnp.bfloat16)                               # (TB, D_IN)

    # Packed biases, one lane-dense buffer; static row slices.
    b1 = b_ref[0:1, :D_H]       # (1, 128) f32
    b2 = b_ref[1:2, :D_ZP]      # (1, 128) f32, cols 64..127 are exactly 0
    b3 = b_ref[2:3, :D_H]       # (1, 128) f32
    b4 = b_ref[3:4, :]          # (1, 256) f32

    # ---- encoder ----
    h1 = jnp.dot(x, w1_ref[...], preferred_element_type=jnp.float32) + b1
    h1 = jnp.maximum(h1, 0.0)                                          # ReLU (f32 VPU)

    z = jnp.dot(h1.astype(jnp.bfloat16), w2_ref[...],
                preferred_element_type=jnp.float32) + b2
    z = jnp.maximum(z, 0.0)                                            # ReLU; cols 64.. are 0

    # ---- decoder ----
    h2 = jnp.dot(z.astype(jnp.bfloat16), w3_ref[...],
                 preferred_element_type=jnp.float32) + b3
    h2 = jnp.maximum(h2, 0.0)                                          # ReLU

    y = jnp.dot(h2.astype(jnp.bfloat16), w4_ref[...],
                preferred_element_type=jnp.float32) + b4
    out_ref[...] = jax.nn.sigmoid(y)                                   # Sigmoid (EUP)


def _pack_params(params):
    """Pad the latent path to 128 lanes and pack the 4 biases into one buffer.

    Padding columns/rows are exactly zero, so ReLU(0)=0 keeps the math
    identical to the logical D_Z=64 module.
    """
    (w1, b1), (w2, b2), (w3, b3), (w4, b4) = params
    w2p = jnp.zeros((D_H, D_ZP), jnp.bfloat16).at[:, :D_Z].set(w2)
    w3p = jnp.zeros((D_ZP, D_H), jnp.bfloat16).at[:D_Z, :].set(w3)

    bp = jnp.zeros((4, D_IN), jnp.float32)
    bp = bp.at[0, :D_H].set(b1.reshape(-1))
    bp = bp.at[1, :D_Z].set(b2.reshape(-1))
    bp = bp.at[2, :D_H].set(b3.reshape(-1))
    bp = bp.at[3, :].set(b4.reshape(-1))
    return w1, w2p, w3p, w4, bp


def autoencoder_forward(x, params, *, tb=256):
    """Forward pass over a batch of rows, tb rows per grid step."""
    b_in = x.shape[0]
    w1, w2p, w3p, w4, bp = _pack_params(params)

    # Pad the batch to a multiple of the tile (zeros; sliced off at the end).
    b_pad = max(tb, ((b_in + tb - 1) // tb) * tb)
    if b_pad != b_in:
        x = jnp.pad(x, ((0, b_pad - b_in), (0, 0)))
    n_tiles = b_pad // tb

    # Advisory cost hint for the XLA scheduler (uses padded-latent MXU work).
    matmul_flops = 2 * b_pad * (D_IN * D_H + D_H * D_ZP + D_ZP * D_H + D_H * D_IN)
    weight_bytes = 2 * (D_IN * D_H + D_H * D_ZP + D_ZP * D_H + D_H * D_IN)  # bf16
    bias_bytes = 4 * 4 * D_IN
    io_bytes = 4 * b_pad * D_IN * 2  # x in + out, f32
    cost = pl.CostEstimate(
        flops=matmul_flops,
        transcendentals=b_pad * D_IN,                  # sigmoid exp
        bytes_accessed=weight_bytes + bias_bytes + io_bytes,
    )

    const = lambda i: (0, 0)   # weights/biases: DMA once, stay resident
    out = pl.pallas_call(
        ae_kernel,
        out_shape=jax.ShapeDtypeStruct((b_pad, D_IN), jnp.float32),
        grid=(n_tiles,),
        in_specs=[
            pl.BlockSpec((tb, D_IN), lambda i: (i, 0)),    # x (batch-tiled)
            pl.BlockSpec((D_IN, D_H), const),              # w1
            pl.BlockSpec((D_H, D_ZP), const),              # w2 (padded)
            pl.BlockSpec((D_ZP, D_H), const),              # w3 (padded)
            pl.BlockSpec((D_H, D_IN), const),              # w4
            pl.BlockSpec((4, D_IN), const),                # packed biases
        ],
        out_specs=pl.BlockSpec((tb, D_IN), lambda i: (i, 0)),
        compiler_params=pltpu.CompilerParams(
            dimension_semantics=("parallel",),             # v7x: split batch over 2 TCs
            vmem_limit_bytes=32 * 1024 * 1024,             # safe on v5e's 16 MiB default
        ),
        cost_estimate=cost,
    )(x, w1, w2p, w3p, w4, bp)

    return out[:b_in]


def init_params(key):
    """torch.nn.Linear-style init: U(-1/sqrt(fan_in), 1/sqrt(fan_in)).

    Weights are cast to bf16 for storage/transfer (MXU-native); biases stay
    f32.  Shapes are the LOGICAL module shapes (latent = D_Z); padding/packing
    happens inside the kernel wrapper.
    """
    dims = [(D_IN, D_H), (D_H, D_Z), (D_Z, D_H), (D_H, D_IN)]
    params = []
    keys = jax.random.split(key, 2 * len(dims))
    for li, (fan_in, fan_out) in enumerate(dims):
        bound = 1.0 / jnp.sqrt(fan_in)
        w = jax.random.uniform(keys[2 * li], (fan_in, fan_out),
                               minval=-bound, maxval=bound, dtype=jnp.float32)
        b = jax.random.uniform(keys[2 * li + 1], (1, fan_out),
                               minval=-bound, maxval=bound, dtype=jnp.float32)
        params.append((w.astype(jnp.bfloat16), b))
    return params


def reference_forward(x, params):
    """Pure-JAX reference using the same (bf16-stored) weights, computed in f32."""
    (w1, b1), (w2, b2), (w3, b3), (w4, b4) = params
    w1, w2, w3, w4 = (w.astype(jnp.float32) for w in (w1, w2, w3, w4))
    h1 = jnp.maximum(x @ w1 + b1, 0.0)
    z = jnp.maximum(h1 @ w2 + b2, 0.0)
    h2 = jnp.maximum(z @ w3 + b3, 0.0)
    return jax.nn.sigmoid(h2 @ w4 + b4)


if __name__ == "__main__":
    B = 512  # 2 grid steps of TB=256 rows
    key = jax.random.PRNGKey(0)
    kx, kp = jax.random.split(key)
    x = jax.random.normal(kx, (B, D_IN), dtype=jnp.float32)
    params = init_params(kp)

    out = autoencoder_forward(x, params, tb=256)
    out = jax.block_until_ready(out)

    ref = reference_forward(x, params)
    assert out.shape == (B, D_IN), out.shape
    # bf16 matmul inputs (f32 accumulation) -> loosened tolerance.
    assert jnp.allclose(out, ref, atol=2e-2, rtol=2e-2), "mismatch vs JAX reference"

    print("KERNEL_OK")
</pallas_src>

<mosaic_0001>
module attributes {stable_mosaic.version = 11 : i64} {
  func.func @ae_kernel(%arg0: i32, %arg1: memref<256x256xf32, #tpu.memory_space<vmem>>, %arg2: memref<256x128xbf16, #tpu.memory_space<vmem>>, %arg3: memref<128x128xbf16, #tpu.memory_space<vmem>>, %arg4: memref<128x128xbf16, #tpu.memory_space<vmem>>, %arg5: memref<128x256xbf16, #tpu.memory_space<vmem>>, %arg6: memref<4x256xf32, #tpu.memory_space<vmem>>, %arg7: memref<256x256xf32, #tpu.memory_space<vmem>>) attributes {dimension_semantics = [#tpu.dimension_semantics<parallel>], iteration_bounds = array<i64: 2>, scalar_prefetch = 0 : i64, scratch_operands = 0 : i64, tpu.core_type = #tpu.core_type<tc>, window_params = [{transform_indices = @transform_0, window_bounds = array<i64: 256, 256>}, {pipeline_mode = #tpu.pipeline_mode<synchronous>, transform_indices = @transform_1, window_bounds = array<i64: 256, 128>}, {pipeline_mode = #tpu.pipeline_mode<synchronous>, transform_indices = @transform_2, window_bounds = array<i64: 128, 128>}, {pipeline_mode = #tpu.pipeline_mode<synchronous>, transform_indices = @transform_3, window_bounds = array<i64: 128, 128>}, {pipeline_mode = #tpu.pipeline_mode<synchronous>, transform_indices = @transform_4, window_bounds = array<i64: 128, 256>}, {pipeline_mode = #tpu.pipeline_mode<synchronous>, transform_indices = @transform_5, window_bounds = array<i64: 4, 256>}, {transform_indices = @transform_6, window_bounds = array<i64: 256, 256>}]} {
    %c0 = arith.constant 0 : index
    %c0_0 = arith.constant 0 : index
    %0 = vector.load %arg1[%c0, %c0_0] : memref<256x256xf32, #tpu.memory_space<vmem>>, vector<256x256xf32>
    %1 = arith.truncf %0 : vector<256x256xf32> to vector<256x256xbf16>
    %c0_1 = arith.constant 0 : index
    %c0_2 = arith.constant 0 : index
    %2 = vector.load %arg6[%c0_1, %c0_2] : memref<4x256xf32, #tpu.memory_space<vmem>>, vector<1x128xf32>
    %c1 = arith.constant 1 : index
    %c0_3 = arith.constant 0 : index
    %3 = vector.load %arg6[%c1, %c0_3] : memref<4x256xf32, #tpu.memory_space<vmem>>, vector<1x128xf32>
    %c2 = arith.constant 2 : index
    %c0_4 = arith.constant 0 : index
    %4 = vector.load %arg6[%c2, %c0_4] : memref<4x256xf32, #tpu.memory_space<vmem>>, vector<1x128xf32>
    %c3 = arith.constant 3 : index
    %c0_5 = arith.constant 0 : index
    %5 = vector.load %arg6[%c3, %c0_5] : memref<4x256xf32, #tpu.memory_space<vmem>>, vector<1x256xf32>
    %c0_6 = arith.constant 0 : index
    %c0_7 = arith.constant 0 : index
    %6 = vector.load %arg2[%c0_6, %c0_7] : memref<256x128xbf16, #tpu.memory_space<vmem>>, vector<256x128xbf16>
    %cst = arith.constant dense<0.000000e+00> : vector<256x128xf32>
    %7 = tpu.matmul %1, %6, %cst {dimension_numbers = #tpu.dot_dimension_numbers<[1], [0], [0], [1], [0, 0, 1, 1], [], []>} : vector<256x256xbf16>, vector<256x128xbf16>, vector<256x128xf32> -> vector<256x128xf32>
    %8 = vector.broadcast %2 : vector<1x128xf32> to vector<256x128xf32>
    %9 = arith.addf %7, %8 : vector<256x128xf32>
    %cst_8 = arith.constant 0.000000e+00 : f32
    %10 = vector.broadcast %cst_8 : f32 to vector<256x128xf32>
    %11 = arith.maximumf %9, %10 : vector<256x128xf32>
    %12 = arith.truncf %11 : vector<256x128xf32> to vector<256x128xbf16>
    %c0_9 = arith.constant 0 : index
    %c0_10 = arith.constant 0 : index
    %13 = vector.load %arg3[%c0_9, %c0_10] : memref<128x128xbf16, #tpu.memory_space<vmem>>, vector<128x128xbf16>
    %cst_11 = arith.constant dense<0.000000e+00> : vector<256x128xf32>
    %14 = tpu.matmul %12, %13, %cst_11 {dimension_numbers = #tpu.dot_dimension_numbers<[1], [0], [0], [1], [0, 0, 1, 1], [], []>} : vector<256x128xbf16>, vector<128x128xbf16>, vector<256x128xf32> -> vector<256x128xf32>
    %15 = vector.broadcast %3 : vector<1x128xf32> to vector<256x128xf32>
    %16 = arith.addf %14, %15 : vector<256x128xf32>
    %cst_12 = arith.constant 0.000000e+00 : f32
    %17 = vector.broadcast %cst_12 : f32 to vector<256x128xf32>
    %18 = arith.maximumf %16, %17 : vector<256x128xf32>
    %19 = arith.truncf %18 : vector<256x128xf32> to vector<256x128xbf16>
    %c0_13 = arith.constant 0 : index
    %c0_14 = arith.constant 0 : index
    %20 = vector.load %arg4[%c0_13, %c0_14] : memref<128x128xbf16, #tpu.memory_space<vmem>>, vector<128x128xbf16>
    %cst_15 = arith.constant dense<0.000000e+00> : vector<256x128xf32>
    %21 = tpu.matmul %19, %20, %cst_15 {dimension_numbers = #tpu.dot_dimension_numbers<[1], [0], [0], [1], [0, 0, 1, 1], [], []>} : vector<256x128xbf16>, vector<128x128xbf16>, vector<256x128xf32> -> vector<256x128xf32>
    %22 = vector.broadcast %4 : vector<1x128xf32> to vector<256x128xf32>
    %23 = arith.addf %21, %22 : vector<256x128xf32>
    %cst_16 = arith.constant 0.000000e+00 : f32
    %24 = vector.broadcast %cst_16 : f32 to vector<256x128xf32>
    %25 = arith.maximumf %23, %24 : vector<256x128xf32>
    %26 = arith.truncf %25 : vector<256x128xf32> to vector<256x128xbf16>
    %c0_17 = arith.constant 0 : index
    %c0_18 = arith.constant 0 : index
    %27 = vector.load %arg5[%c0_17, %c0_18] : memref<128x256xbf16, #tpu.memory_space<vmem>>, vector<128x256xbf16>
    %cst_19 = arith.constant dense<0.000000e+00> : vector<256x256xf32>
    %28 = tpu.matmul %26, %27, %cst_19 {dimension_numbers = #tpu.dot_dimension_numbers<[1], [0], [0], [1], [0, 0, 1, 1], [], []>} : vector<256x128xbf16>, vector<128x256xbf16>, vector<256x256xf32> -> vector<256x256xf32>
    %29 = vector.broadcast %5 : vector<1x256xf32> to vector<256x256xf32>
    %30 = arith.addf %28, %29 : vector<256x256xf32>
    %31 = arith.negf %30 : vector<256x256xf32>
    %32 = math.exp %31 : vector<256x256xf32>
    %cst_20 = arith.constant 1.000000e+00 : f32
    %33 = vector.broadcast %cst_20 : f32 to vector<256x256xf32>
    %34 = arith.addf %33, %32 : vector<256x256xf32>
    %35 = arith.divf %33, %34 : vector<256x256xf32>
    %c0_21 = arith.constant 0 : index
    %c0_22 = arith.constant 0 : index
    %36 = vector.load %arg7[%c0_21, %c0_22] : memref<256x256xf32, #tpu.memory_space<vmem>>, vector<256x256xf32>
    tpu.vector_store %arg7[%c0_21, %c0_22], %35 {strides = array<i32>} : memref<256x256xf32, #tpu.memory_space<vmem>>, vector<256x256xf32>,
    return
  }
  func.func @transform_0(%arg0: i32) -> (i32, i32) {
    %c0_i32 = arith.constant 0 : i32
    %c0_i32_0 = arith.constant 0 : i32
    return %arg0, %c0_i32 : i32, i32
  }
  func.func @transform_1(%arg0: i32) -> (i32, i32) {
    %c0_i32 = arith.constant 0 : i32
    %c0_i32_0 = arith.constant 0 : i32
    %c0_i32_1 = arith.constant 0 : i32
    return %c0_i32, %c0_i32_0 : i32, i32
  }
  func.func @transform_2(%arg0: i32) -> (i32, i32) {
    %c0_i32 = arith.constant 0 : i32
    %c0_i32_0 = arith.constant 0 : i32
    %c0_i32_1 = arith.constant 0 : i32
    return %c0_i32, %c0_i32_0 : i32, i32
  }
  func.func @transform_3(%arg0: i32) -> (i32, i32) {
    %c0_i32 = arith.constant 0 : i32
    %c0_i32_0 = arith.constant 0 : i32
    %c0_i32_1 = arith.constant 0 : i32
    return %c0_i32, %c0_i32_0 : i32, i32
  }
  func.func @transform_4(%arg0: i32) -> (i32, i32) {
    %c0_i32 = arith.constant 0 : i32
    %c0_i32_0 = arith.constant 0 : i32
    %c0_i32_1 = arith.constant 0 : i32
    return %c0_i32, %c0_i32_0 : i32, i32
  }
  func.func @transform_5(%arg0: i32) -> (i32, i32) {
    %c0_i32 = arith.constant 0 : i32
    %c0_i32_0 = arith.constant 0 : i32
    %c0_i32_1 = arith.constant 0 : i32
    return %c0_i32, %c0_i32_0 : i32, i32
  }
  func.func @transform_6(%arg0: i32) -> (i32, i32) {
    %c0_i32 = arith.constant 0 : i32
    %c0_i32_0 = arith.constant 0 : i32
    return %arg0, %c0_i32 : i32, i32
  }
}

</mosaic_0001>

<llo_original>
// kernel: tpu_custom_call.1
$region0: #{tpu_custom_call.1}
  #allocation0 [shape = 'u32[]', space=smem, size = 0x4, offset = 0x4, fixed_abs, tag = 'smem constant byte address 0x4 - core index']
  #allocation1 [shape = 'u32[144,128]{1,0:T(1,128)}', space=vmem, size = 0x12000, scoped, tag = 'internal scratch']
  %s0 = inlined_call_operand.hbm [shape: f32[512,256], index: 0, kind: input, shape index: {}]
  %s1 = inlined_call_operand.hbm [shape: bf16[256,128], index: 1, kind: input, shape index: {}]
  %s2 = inlined_call_operand.hbm [shape: bf16[128,128], index: 2, kind: input, shape index: {}]
  %s3 = inlined_call_operand.hbm [shape: bf16[128,128], index: 3, kind: input, shape index: {}]
  %s4 = inlined_call_operand.hbm [shape: bf16[128,256], index: 4, kind: input, shape index: {}]
  %s5 = inlined_call_operand.vmem [shape: f32[4,256], index: 5, kind: input, shape index: {}]
  %s6 = inlined_call_operand.hbm [shape: f32[512,256], index: 6, kind: output, shape index: {}]
  %s7 = sld [smem:[#allocation0]]
  $region77: #{tpu_custom_call.1} parent=0
    _
  %s9 = ssub.s32 1, %s7
  %s10 = scalar_select 0, %s9, %s7
  $region1: #{tpu_custom_call.1} parent=0
    #allocation2 [shape = 'u8[524288]{0}', space=vmem, size = 0x80000, scoped, tag = 'input window, operand 0']
    #allocation3 [shape = 's32[2]{0}', space=sflag, size = 0x8, scoped, tag = 'scoped memory for tpu_custom_call.1']
    #allocation4 [shape = 's32[2]{0}', space=sflag, size = 0x8, scoped, tag = 'scoped memory for tpu_custom_call.1']
    #allocation5 [shape = 'u8[65536]{0}', space=vmem, size = 0x10000, scoped, tag = 'input window, operand 1, single buffered']
    #allocation6 [shape = 's32[1]{0}', space=sflag, size = 0x4, scoped, tag = 'scoped memory for tpu_custom_call.1']
    #allocation7 [shape = 'u8[32768]{0}', space=vmem, size = 0x8000, scoped, tag = 'input window, operand 2, single buffered']
    #allocation8 [shape = 'u8[32768]{0}', space=vmem, size = 0x8000, scoped, tag = 'input window, operand 3, single buffered']
    #allocation9 [shape = 's32[1]{0}', space=sflag, size = 0x4, scoped, tag = 'scoped memory for tpu_custom_call.1']
    #allocation10 [shape = 'u8[65536]{0}', space=vmem, size = 0x10000, scoped, tag = 'input window, operand 4, single buffered']
    #allocation11 [shape = 'u8[524288]{0}', space=vmem, size = 0x80000, scoped, tag = 'output window, operand 0']
    %11 = vsyncpa [#allocation3], 0
    %s12 = scalar_lea.sflag [#allocation3], 1
    %13 = vsyncpa %s12, 0
    %14 = vsyncpa [#allocation6], 0
    %15 = vsyncpa [#allocation9], 0
    %16 = vsyncpa [#allocation4], 0
    %s17 = scalar_lea.sflag [#allocation4], 1
    %18 = vsyncpa %s17, 0
    loop: start=0, step=1, limit=4
    $region2: #{tpu_custom_call.1} parent=1 // loop_pre_header
      _
    $region3: #{tpu_custom_call.1} parent=1 // loop_header
      %s20 = sphi 0, %s24
      %p21 = scmp.ge.s32.totalorder %s20, 4
      %s30 = sphi 0, %s32
      %s33 = sphi 0, %s30
      %s34 = sphi 0, %s33
      %s50 = sphi 0, %s34
      %s54 = sphi 0, %s54
      %s56 = sphi 0, %s54
      %s57 = sphi 0, %s56
      %s71 = sphi 0, %s57
      %s75 = sphi 0, %s75
      %s77 = sphi 0, %s75
      %s78 = sphi 0, %s77
      %s92 = sphi 0, %s78
      %s96 = sphi 0, %s96
      %s98 = sphi 0, %s96
      %s99 = sphi 0, %s98
      %s113 = sphi 0, %s99
      %s117 = sphi 0, %s117
      %s119 = sphi 0, %s117
      %s120 = sphi 0, %s119
      %s134 = sphi 0, %s120
      %s138 = sphi 0, %s138
      %s140 = sphi 0, %s138
      %s141 = sphi 0, %s140
      %s155 = sphi 0, %s141
      %s161 = sphi 0, %s163
      %s164 = sphi 0, %s161
      %s165 = sphi 0, %s164
      %s181 = sphi 0, %s165
    $region4: #{tpu_custom_call.1} parent=1 // loop_header_branch
      %23 = sbr.rel (%p21) target = $region8
    $region5: #{tpu_custom_call.1} parent=1 // loop_body
      %s25 = ssub.s32 %s20, 1
      %s26 = ssub.s32 %s20, 2
      %s27 = sadd.s32 %s20, 1
      %s28 = ssub.s32 %s20, %s27
      %p29 = scmp.eq.s32.totalorder %s28, 0
      %s31 = sadd.s32 %s30, 1
      %s32 = scalar_select %p29, %s30, %s31
      %p35 = pneg %p29
      %p36 = scmp.eq.s32.totalorder %s20, 1
      %p37 = por %p35, %p36
      %p38 = scmp.ne.s32.totalorder %s30, %s33
      %p39 = scmp.eq.s32.totalorder %s20, 0
      %p40 = por %p38, %p39
      %p41 = scmp.ne.s32.totalorder %s30, %s33
      %p42 = scmp.eq.s32.totalorder %s25, 1
      %p43 = por %p41, %p42
      %p44 = scmp.ne.s32.totalorder %s33, %s34
      %p45 = scmp.eq.s32.totalorder %s25, 0
      %p46 = por %p44, %p45
      %p47 = scmp.ne.s32.totalorder %s33, %s34
      %p48 = scmp.eq.s32.totalorder %s26, 1
      %p49 = por %p47, %p48
      %p51 = scmp.ne.s32.totalorder %s34, %s50
      %p52 = scmp.eq.s32.totalorder %s26, 0
      %p53 = por %p51, %p52
      %s55 = sadd.s32 %s54, 1
      %p58 = scmp.eq.s32.totalorder %s20, 1
      %p59 = scmp.ne.s32.totalorder %s54, %s56
      %p60 = scmp.eq.s32.totalorder %s20, 0
      %p61 = por %p59, %p60
      %p62 = scmp.ne.s32.totalorder %s54, %s56
      %p63 = scmp.eq.s32.totalorder %s25, 1
      %p64 = por %p62, %p63
      %p65 = scmp.ne.s32.totalorder %s56, %s57
      %p66 = scmp.eq.s32.totalorder %s25, 0
      %p67 = por %p65, %p66
      %p68 = scmp.ne.s32.totalorder %s56, %s57
      %p69 = scmp.eq.s32.totalorder %s26, 1
      %p70 = por %p68, %p69
      %p72 = scmp.ne.s32.totalorder %s57, %s71
      %p73 = scmp.eq.s32.totalorder %s26, 0
      %p74 = por %p72, %p73
      %s76 = sadd.s32 %s75, 1
      %p79 = scmp.eq.s32.totalorder %s20, 1
      %p80 = scmp.ne.s32.totalorder %s75, %s77
      %p81 = scmp.eq.s32.totalorder %s20, 0
      %p82 = por %p80, %p81
      %p83 = scmp.ne.s32.totalorder %s75, %s77
      %p84 = scmp.eq.s32.totalorder %s25, 1
      %p85 = por %p83, %p84
      %p86 = scmp.ne.s32.totalorder %s77, %s78
      %p87 = scmp.eq.s32.totalorder %s25, 0
      %p88 = por %p86, %p87
      %p89 = scmp.ne.s32.totalorder %s77, %s78
      %p90 = scmp.eq.s32.totalorder %s26, 1
      %p91 = por %p89, %p90
      %p93 = scmp.ne.s32.totalorder %s78, %s92
      %p94 = scmp.eq.s32.totalorder %s26, 0
      %p95 = por %p93, %p94
      %s97 = sadd.s32 %s96, 1
      %p100 = scmp.eq.s32.totalorder %s20, 1
      %p101 = scmp.ne.s32.totalorder %s96, %s98
      %p102 = scmp.eq.s32.totalorder %s20, 0
      %p103 = por %p101, %p102
      %p104 = scmp.ne.s32.totalorder %s96, %s98
      %p105 = scmp.eq.s32.totalorder %s25, 1
      %p106 = por %p104, %p105
      %p107 = scmp.ne.s32.totalorder %s98, %s99
      %p108 = scmp.eq.s32.totalorder %s25, 0
      %p109 = por %p107, %p108
      %p110 = scmp.ne.s32.totalorder %s98, %s99
      %p111 = scmp.eq.s32.totalorder %s26, 1
      %p112 = por %p110, %p111
      %p114 = scmp.ne.s32.totalorder %s99, %s113
      %p115 = scmp.eq.s32.totalorder %s26, 0
      %p116 = por %p114, %p115
      %s118 = sadd.s32 %s117, 1
      %p121 = scmp.eq.s32.totalorder %s20, 1
      %p122 = scmp.ne.s32.totalorder %s117, %s119
      %p123 = scmp.eq.s32.totalorder %s20, 0
      %p124 = por %p122, %p123
      %p125 = scmp.ne.s32.totalorder %s117, %s119
      %p126 = scmp.eq.s32.totalorder %s25, 1
      %p127 = por %p125, %p126
      %p128 = scmp.ne.s32.totalorder %s119, %s120
      %p129 = scmp.eq.s32.totalorder %s25, 0
      %p130 = por %p128, %p129
      %p131 = scmp.ne.s32.totalorder %s119, %s120
      %p132 = scmp.eq.s32.totalorder %s26, 1
      %p133 = por %p131, %p132
      %p135 = scmp.ne.s32.totalorder %s120, %s134
      %p136 = scmp.eq.s32.totalorder %s26, 0
      %p137 = por %p135, %p136
      %s139 = sadd.s32 %s138, 1
      %p142 = scmp.eq.s32.totalorder %s20, 1
      %p143 = scmp.ne.s32.totalorder %s138, %s140
      %p144 = scmp.eq.s32.totalorder %s20, 0
      %p145 = por %p143, %p144
      %p146 = scmp.ne.s32.totalorder %s138, %s140
      %p147 = scmp.eq.s32.totalorder %s25, 1
      %p148 = por %p146, %p147
      %p149 = scmp.ne.s32.totalorder %s140, %s141
      %p150 = scmp.eq.s32.totalorder %s25, 0
      %p151 = por %p149, %p150
      %p152 = scmp.ne.s32.totalorder %s140, %s141
      %p153 = scmp.eq.s32.totalorder %s26, 1
      %p154 = por %p152, %p153
      %p156 = scmp.ne.s32.totalorder %s141, %s155
      %p157 = scmp.eq.s32.totalorder %s26, 0
      %p158 = por %p156, %p157
      %s159 = ssub.s32 %s20, %s27
      %p160 = scmp.eq.s32.totalorder %s159, 0
      %s162 = sadd.s32 %s161, 1
      %s163 = scalar_select %p160, %s161, %s162
      %p166 = pneg %p160
      %p167 = scmp.eq.s32.totalorder %s20, 1
      %p168 = por %p166, %p167
      %p169 = scmp.ne.s32.totalorder %s161, %s164
      %p170 = scmp.eq.s32.totalorder %s20, 0
      %p171 = por %p169, %p170
      %p172 = scmp.ne.s32.totalorder %s161, %s164
      %p173 = scmp.eq.s32.totalorder %s25, 1
      %p174 = por %p172, %p173
      %p175 = scmp.ne.s32.totalorder %s164, %s165
      %p176 = scmp.eq.s32.totalorder %s25, 0
      %p177 = por %p175, %p176
      %p178 = scmp.ne.s32.totalorder %s164, %s165
      %p179 = scmp.eq.s32.totalorder %s26, 1
      %p180 = por %p178, %p179
      %p182 = scmp.ne.s32.totalorder %s165, %s181
      %p183 = scmp.eq.s32.totalorder %s26, 0
      %p184 = por %p182, %p183
      %p185 = scmp.le.s32.totalorder 1, %s20
      %p186 = scmp.lt.s32.totalorder %s20, 3
      %p187 = pnand %p185, %p186
      %p188 = pneg %p187
      // Predicated region
      $region9: #{tpu_custom_call.1} parent=5 // pred_check
        _
      $region10: #{tpu_custom_call.1} parent=5 // pred_check_branch
        %190 = sbr.rel (%p187) target = $region12
      $region11: #{tpu_custom_call.1} parent=5 // pred_region
        %s191 = ssub.s32 %s20, 1
        // Predicated region
        $region13: #{tpu_custom_call.1} parent=11 // pred_check
          %p192 = pneg %p67
        $region14: #{tpu_custom_call.1} parent=11 // pred_check_branch
          %194 = sbr.rel (%p192) target = $region16
        $region15: #{tpu_custom_call.1} parent=11 // pred_region
          %s196 = ssub.s32 2048, 2048
          %197 = vsyncadd [#allocation6], %s196
          %s198 = sshll.u32 [#allocation5], 4
          %s199 = int_to_ptr.vmem [resolvable:$true] %s198
          %204 = dma.hbm_to_vmem [thread:$0]  %s1, 2048, %s199, [#allocation6], 64, 64, 4
        $region16: #{tpu_custom_call.1} parent=11 // pred_fallthru
          _
        // Predicated region
        $region17: #{tpu_custom_call.1} parent=11 // pred_check
          %p205 = pneg %p88
        $region18: #{tpu_custom_call.1} parent=11 // pred_check_branch
          %207 = sbr.rel (%p205) target = $region20
        $region19: #{tpu_custom_call.1} parent=11 // pred_region
          %s209 = ssub.s32 1024, 1024
          %210 = vsyncadd [#allocation6], %s209
          %s211 = sshll.u32 [#allocation7], 4
          %s212 = int_to_ptr.vmem [resolvable:$true] %s211
          %217 = dma.hbm_to_vmem [thread:$0]  %s2, 1024, %s212, [#allocation6], 64, 64, 4
        $region20: #{tpu_custom_call.1} parent=11 // pred_fallthru
          _
        // Predicated region
        $region21: #{tpu_custom_call.1} parent=11 // pred_check
          %p218 = pneg %p109
        $region22: #{tpu_custom_call.1} parent=11 // pred_check_branch
          %220 = sbr.rel (%p218) target = $region24
        $region23: #{tpu_custom_call.1} parent=11 // pred_region
          %s222 = ssub.s32 1024, 1024
          %223 = vsyncadd [#allocation9], %s222
          %s224 = sshll.u32 [#allocation8], 4
          %s225 = int_to_ptr.vmem [resolvable:$true] %s224
          %230 = dma.hbm_to_vmem [thread:$0]  %s3, 1024, %s225, [#allocation9], 64, 64, 4
        $region24: #{tpu_custom_call.1} parent=11 // pred_fallthru
          _
        // Predicated region
        $region25: #{tpu_custom_call.1} parent=11 // pred_check
          %p231 = pneg %p130
        $region26: #{tpu_custom_call.1} parent=11 // pred_check_branch
          %233 = sbr.rel (%p231) target = $region28
        $region27: #{tpu_custom_call.1} parent=11 // pred_region
          %s235 = ssub.s32 2048, 2048
          %236 = vsyncadd [#allocation9], %s235
          %s237 = sshll.u32 [#allocation10], 4
          %s238 = int_to_ptr.vmem [resolvable:$true] %s237
          %243 = dma.hbm_to_vmem [thread:$0]  %s4, 2048, %s238, [#allocation9], 128, 128, 8
        $region28: #{tpu_custom_call.1} parent=11 // pred_fallthru
          _
        // Predicated region
        $region29: #{tpu_custom_call.1} parent=11 // pred_check
          %p244 = pneg %p151
        $region30: #{tpu_custom_call.1} parent=11 // pred_check_branch
          %246 = sbr.rel (%p244) target = $region32
        $region31: #{tpu_custom_call.1} parent=11 // pred_region
          _
        $region32: #{tpu_custom_call.1} parent=11 // pred_fallthru
          _
      $region12: #{tpu_custom_call.1} parent=5 // pred_fallthru
        _
      %p247 = scmp.lt.s32.totalorder %s20, 2
      // Predicated region
      $region33: #{tpu_custom_call.1} parent=5 // pred_check
        %p248 = pneg %p247
      $region34: #{tpu_custom_call.1} parent=5 // pred_check_branch
        %250 = sbr.rel (%p248) target = $region36
      $region35: #{tpu_custom_call.1} parent=5 // pred_region
        // Predicated region
        $region37: #{tpu_custom_call.1} parent=35 // pred_check
          %p251 = pneg %p40
        $region38: #{tpu_custom_call.1} parent=35 // pred_check_branch
          %253 = sbr.rel (%p251) target = $region40
        $region39: #{tpu_custom_call.1} parent=35 // pred_region
          %s254 = sand.u32 %s30, 1
          %s255 = scalar_lea.sflag [#allocation3], %s254
          %s256 = sand.u32 %s30, 1
          %s257 = smul.addr %s256, 512
          %s258 = scalar_lea.vmem [#allocation2], %s257
          %s259 = smul.u32 32, %s20
          %s261 = ssub.s32 8192, 8192
          %262 = vsyncadd %s255, %s261
          %s263 = smul.addr %s259, 2
          %s264 = smul.addr %s263, 128
          %s265 = scalar_lea.hbm %s0, %s264
          %s266 = sshll.u32 %s258, 4
          %s267 = int_to_ptr.vmem [resolvable:$true] %s266
          %272 = dma.hbm_to_vmem [thread:$0]  %s265, 8192, %s267, %s255, 256, 256, 16
        $region40: #{tpu_custom_call.1} parent=35 // pred_fallthru
          _
      $region36: #{tpu_custom_call.1} parent=5 // pred_fallthru
        _
      %p273 = scmp.le.s32.totalorder 1, %s20
      %p274 = scmp.lt.s32.totalorder %s20, 3
      %p275 = pnand %p273, %p274
      %p276 = pneg %p275
      // Predicated region
      $region41: #{tpu_custom_call.1} parent=5 // pred_check
        _
      $region42: #{tpu_custom_call.1} parent=5 // pred_check_branch
        %278 = sbr.rel (%p275) target = $region44
      $region43: #{tpu_custom_call.1} parent=5 // pred_region
        %s279 = ssub.s32 %s20, 1
        %s280 = sand.u32 %s33, 1
        %s281 = scalar_lea.sflag [#allocation3], %s280
        %s282 = sand.u32 %s33, 1
        %s283 = smul.addr %s282, 512
        %s284 = scalar_lea.vmem [#allocation2], %s283
        // Predicated region
        $region45: #{tpu_custom_call.1} parent=43 // pred_check
          %p285 = pneg %p46
        $region46: #{tpu_custom_call.1} parent=43 // pred_check_branch
          %287 = sbr.rel (%p285) target = $region48
        $region47: #{tpu_custom_call.1} parent=43 // pred_region
          %288 = dma.done %s281, 8192
        $region48: #{tpu_custom_call.1} parent=43 // pred_fallthru
          _
        // Predicated region
        $region49: #{tpu_custom_call.1} parent=43 // pred_check
          %p289 = pneg %p67
        $region50: #{tpu_custom_call.1} parent=43 // pred_check_branch
          %291 = sbr.rel (%p289) target = $region52
        $region51: #{tpu_custom_call.1} parent=43 // pred_region
          %292 = dma.done [#allocation6], 2048
        $region52: #{tpu_custom_call.1} parent=43 // pred_fallthru
          _
        // Predicated region
        $region53: #{tpu_custom_call.1} parent=43 // pred_check
          %p293 = pneg %p88
        $region54: #{tpu_custom_call.1} parent=43 // pred_check_branch
          %295 = sbr.rel (%p293) target = $region56
        $region55: #{tpu_custom_call.1} parent=43 // pred_region
          %296 = dma.done [#allocation6], 1024
        $region56: #{tpu_custom_call.1} parent=43 // pred_fallthru
          _
        // Predicated region
        $region57: #{tpu_custom_call.1} parent=43 // pred_check
          %p297 = pneg %p109
        $region58: #{tpu_custom_call.1} parent=43 // pred_check_branch
          %299 = sbr.rel (%p297) target = $region60
        $region59: #{tpu_custom_call.1} parent=43 // pred_region
          %300 = dma.done [#allocation9], 1024
        $region60: #{tpu_custom_call.1} parent=43 // pred_fallthru
          _
        // Predicated region
        $region61: #{tpu_custom_call.1} parent=43 // pred_check
          %p301 = pneg %p130
        $region62: #{tpu_custom_call.1} parent=43 // pred_check_branch
          %303 = sbr.rel (%p301) target = $region64
        $region63: #{tpu_custom_call.1} parent=43 // pred_region
          %304 = dma.done [#allocation9], 2048
        $region64: #{tpu_custom_call.1} parent=43 // pred_fallthru
          _
        %s305 = sand.u32 %s33, 1
        %s306 = scalar_lea.sflag [#allocation3], %s305
        %s307 = sand.u32 %s33, 1
        %s308 = smul.addr %s307, 512
        %s309 = scalar_lea.vmem [#allocation2], %s308
        %p310 = pneg %p46
        %p311 = pneg %p43
        %p312 = pneg %p67
        %p313 = pneg %p64
        %p314 = pneg %p88
        %p315 = pneg %p85
        %p316 = pneg %p109
        %p317 = pneg %p106
        %p318 = pneg %p130
        %p319 = pneg %p127
        %p320 = pneg %p151
        %p321 = pneg %p148
        %p322 = pneg %p177
        %p323 = pneg %p174
        %s324 = sand.u32 %s164, 1
        %s325 = scalar_lea.sflag [#allocation4], %s324
        %s326 = sand.u32 %s164, 1
        %s327 = smul.addr %s326, 512
        %s328 = scalar_lea.vmem [#allocation11], %s327
        %s329 = smul.u32 32, %s25
        %s330 = smul.u32 32, %s25
        %v332 = vld [vmem:[%s284] sm:$0xff]
        %v333 = vld [vmem:[%s284 + $0x8] sm:$0xff]
        %v334 = vld [vmem:[%s284 + $0x10] sm:$0xff]
        %v335 = vld [vmem:[%s284 + $0x18] sm:$0xff]
        %v336 = vld [vmem:[%s284 + $0x20] sm:$0xff]
        %v337 = vld [vmem:[%s284 + $0x28] sm:$0xff]
        %v338 = vld [vmem:[%s284 + $0x30] sm:$0xff]
        %v339 = vld [vmem:[%s284 + $0x38] sm:$0xff]
        %v340 = vld [vmem:[%s284 + $0x40] sm:$0xff]
        %v341 = vld [vmem:[%s284 + $0x48] sm:$0xff]
        %v342 = vld [vmem:[%s284 + $0x50] sm:$0xff]
        %v343 = vld [vmem:[%s284 + $0x58] sm:$0xff]
        %v344 = vld [vmem:[%s284 + $0x60] sm:$0xff]
        %v345 = vld [vmem:[%s284 + $0x68] sm:$0xff]
        %v346 = vld [vmem:[%s284 + $0x70] sm:$0xff]
        %v347 = vld [vmem:[%s284 + $0x78] sm:$0xff]
        %v348 = vld [vmem:[%s284 + $0x80] sm:$0xff]
        %v349 = vld [vmem:[%s284 + $0x88] sm:$0xff]
        %v350 = vld [vmem:[%s284 + $0x90] sm:$0xff]
        %v351 = vld [vmem:[%s284 + $0x98] sm:$0xff]
        %v352 = vld [vmem:[%s284 + $0xa0] sm:$0xff]
        %v353 = vld [vmem:[%s284 + $0xa8] sm:$0xff]
        %v354 = vld [vmem:[%s284 + $0xb0] sm:$0xff]
        %v355 = vld [vmem:[%s284 + $0xb8] sm:$0xff]
        %v356 = vld [vmem:[%s284 + $0xc0] sm:$0xff]
        %v357 = vld [vmem:[%s284 + $0xc8] sm:$0xff]
        %v358 = vld [vmem:[%s284 + $0xd0] sm:$0xff]
        %v359 = vld [vmem:[%s284 + $0xd8] sm:$0xff]
        %v360 = vld [vmem:[%s284 + $0xe0] sm:$0xff]
        %v361 = vld [vmem:[%s284 + $0xe8] sm:$0xff]
        %v362 = vld [vmem:[%s284 + $0xf0] sm:$0xff]
        %v363 = vld [vmem:[%s284 + $0xf8] sm:$0xff]
        %v364 = vld [vmem:[%s284 + $0x100] sm:$0xff]
        %v365 = vld [vmem:[%s284 + $0x108] sm:$0xff]
        %v366 = vld [vmem:[%s284 + $0x110] sm:$0xff]
        %v367 = vld [vmem:[%s284 + $0x118] sm:$0xff]
        %v368 = vld [vmem:[%s284 + $0x120] sm:$0xff]
        %v369 = vld [vmem:[%s284 + $0x128] sm:$0xff]
        %v370 = vld [vmem:[%s284 + $0x130] sm:$0xff]
        %v371 = vld [vmem:[%s284 + $0x138] sm:$0xff]
        %v372 = vld [vmem:[%s284 + $0x140] sm:$0xff]
        %v373 = vld [vmem:[%s284 + $0x148] sm:$0xff]
        %v374 = vld [vmem:[%s284 + $0x150] sm:$0xff]
        %v375 = vld [vmem:[%s284 + $0x158] sm:$0xff]
        %v376 = vld [vmem:[%s284 + $0x160] sm:$0xff]
        %v377 = vld [vmem:[%s284 + $0x168] sm:$0xff]
        %v378 = vld [vmem:[%s284 + $0x170] sm:$0xff]
        %v379 = vld [vmem:[%s284 + $0x178] sm:$0xff]
        %v380 = vld [vmem:[%s284 + $0x180] sm:$0xff]
        %v381 = vld [vmem:[%s284 + $0x188] sm:$0xff]
        %v382 = vld [vmem:[%s284 + $0x190] sm:$0xff]
        %v383 = vld [vmem:[%s284 + $0x198] sm:$0xff]
        %v384 = vld [vmem:[%s284 + $0x1a0] sm:$0xff]
        %v385 = vld [vmem:[%s284 + $0x1a8] sm:$0xff]
        %v386 = vld [vmem:[%s284 + $0x1b0] sm:$0xff]
        %v387 = vld [vmem:[%s284 + $0x1b8] sm:$0xff]
        %v388 = vld [vmem:[%s284 + $0x1c0] sm:$0xff]
        %v389 = vld [vmem:[%s284 + $0x1c8] sm:$0xff]
        %v390 = vld [vmem:[%s284 + $0x1d0] sm:$0xff]
        %v391 = vld [vmem:[%s284 + $0x1d8] sm:$0xff]
        %v392 = vld [vmem:[%s284 + $0x1e0] sm:$0xff]
        %v393 = vld [vmem:[%s284 + $0x1e8] sm:$0xff]
        %v394 = vld [vmem:[%s284 + $0x1f0] sm:$0xff]
        %v395 = vld [vmem:[%s284 + $0x1f8] sm:$0xff]
        %v396 = vpack.c.bf16 %v334, %v332
        %v397 = vpack.c.bf16 %v335, %v333
        %v398 = vpack.c.bf16 %v338, %v336
        %v399 = vpack.c.bf16 %v339, %v337
        %v400 = vpack.c.bf16 %v342, %v340
        %v401 = vpack.c.bf16 %v343, %v341
        %v402 = vpack.c.bf16 %v346, %v344
        %v403 = vpack.c.bf16 %v347, %v345
        %v404 = vpack.c.bf16 %v350, %v348
        %v405 = vpack.c.bf16 %v351, %v349
        %v406 = vpack.c.bf16 %v354, %v352
        %v407 = vpack.c.bf16 %v355, %v353
        %v408 = vpack.c.bf16 %v358, %v356
        %v409 = vpack.c.bf16 %v359, %v357
        %v410 = vpack.c.bf16 %v362, %v360
        %v411 = vpack.c.bf16 %v363, %v361
        %v412 = vpack.c.bf16 %v366, %v364
        %v413 = vpack.c.bf16 %v367, %v365
        %v414 = vpack.c.bf16 %v370, %v368
        %v415 = vpack.c.bf16 %v371, %v369
        %v416 = vpack.c.bf16 %v374, %v372
        %v417 = vpack.c.bf16 %v375, %v373
        %v418 = vpack.c.bf16 %v378, %v376
        %v419 = vpack.c.bf16 %v379, %v377
        %v420 = vpack.c.bf16 %v382, %v380
        %v421 = vpack.c.bf16 %v383, %v381
        %v422 = vpack.c.bf16 %v386, %v384
        %v423 = vpack.c.bf16 %v387, %v385
        %v424 = vpack.c.bf16 %v390, %v388
        %v425 = vpack.c.bf16 %v391, %v389
        %v426 = vpack.c.bf16 %v394, %v392
        %v427 = vpack.c.bf16 %v395, %v393
        %v428 = vld [vmem:[%s5] sm:$0x1]
        %v429 = vld [vmem:[%s5 + $0x1] sm:$0x1]
        %v430 = vld [vmem:[%s5 + $0x2] sm:$0x1]
        %s431 = scalar_lea.vmem %s5, 3
        %v432 = vld [vmem:[%s431] ss:$4 sm:$0x3]
        %v433 = vld [vmem:[#allocation5] sm:$0xf]
        %v434 = vld [vmem:[#allocation5 + $0x4] sm:$0xf]
        %v435 = vld [vmem:[#allocation5 + $0x8] sm:$0xf]
        %v436 = vld [vmem:[#allocation5 + $0xc] sm:$0xf]
        %v437 = vld [vmem:[#allocation5 + $0x10] sm:$0xf]
        %v438 = vld [vmem:[#allocation5 + $0x14] sm:$0xf]
        %v439 = vld [vmem:[#allocation5 + $0x18] sm:$0xf]
        %v440 = vld [vmem:[#allocation5 + $0x1c] sm:$0xf]
        %v441 = vld [vmem:[#allocation5 + $0x20] sm:$0xf]
        %v442 = vld [vmem:[#allocation5 + $0x24] sm:$0xf]
        %v443 = vld [vmem:[#allocation5 + $0x28] sm:$0xf]
        %v444 = vld [vmem:[#allocation5 + $0x2c] sm:$0xf]
        %v445 = vld [vmem:[#allocation5 + $0x30] sm:$0xf]
        %v446 = vld [vmem:[#allocation5 + $0x34] sm:$0xf]
        %v447 = vld [vmem:[#allocation5 + $0x38] sm:$0xf]
        %v448 = vld [vmem:[#allocation5 + $0x3c] sm:$0xf]
        %v449 = vld [vmem:[#allocation5 + $0x40] sm:$0xf]
        %v450 = vld [vmem:[#allocation5 + $0x44] sm:$0xf]
        %v451 = vld [vmem:[#allocation5 + $0x48] sm:$0xf]
        %v452 = vld [vmem:[#allocation5 + $0x4c] sm:$0xf]
        %v453 = vld [vmem:[#allocation5 + $0x50] sm:$0xf]
        %v454 = vld [vmem:[#allocation5 + $0x54] sm:$0xf]
        %v455 = vld [vmem:[#allocation5 + $0x58] sm:$0xf]
        %v456 = vld [vmem:[#allocation5 + $0x5c] sm:$0xf]
        %v457 = vld [vmem:[#allocation5 + $0x60] sm:$0xf]
        %v458 = vld [vmem:[#allocation5 + $0x64] sm:$0xf]
        %v459 = vld [vmem:[#allocation5 + $0x68] sm:$0xf]
        %v460 = vld [vmem:[#allocation5 + $0x6c] sm:$0xf]
        %v461 = vld [vmem:[#allocation5 + $0x70] sm:$0xf]
        %v462 = vld [vmem:[#allocation5 + $0x74] sm:$0xf]
        %v463 = vld [vmem:[#allocation5 + $0x78] sm:$0xf]
        %v464 = vld [vmem:[#allocation5 + $0x7c] sm:$0xf]
        %v465 = vlaneseq
        %v466 = vshrl.u32 %v465, 7
        %v467 = vsub.s32 0, %v466
        %v468 = vrot.slane %v428, %v467
        %v501 = vunpack.c.l.b16 %v433
        %v502 = vunpack.c.l.b16 %v434
        %v503 = vunpack.c.l.b16 %v435
        %v504 = vunpack.c.l.b16 %v436
        %v505 = vunpack.c.l.b16 %v437
        %v506 = vunpack.c.l.b16 %v438
        %v507 = vunpack.c.l.b16 %v439
        %v508 = vunpack.c.l.b16 %v440
        %v509 = vunpack.c.l.b16 %v441
        %v510 = vunpack.c.l.b16 %v442
        %v511 = vunpack.c.l.b16 %v443
        %v512 = vunpack.c.l.b16 %v444
        %v513 = vunpack.c.l.b16 %v445
        %v514 = vunpack.c.l.b16 %v446
        %v515 = vunpack.c.l.b16 %v447
        %v516 = vunpack.c.l.b16 %v448
        %v517 = vunpack.c.l.b16 %v449
        %v518 = vunpack.c.l.b16 %v450
        %v519 = vunpack.c.l.b16 %v451
        %v520 = vunpack.c.l.b16 %v452
        %v521 = vunpack.c.l.b16 %v453
        %v522 = vunpack.c.l.b16 %v454
        %v523 = vunpack.c.l.b16 %v455
        %v524 = vunpack.c.l.b16 %v456
        %v525 = vunpack.c.l.b16 %v457
        %v526 = vunpack.c.l.b16 %v458
        %v527 = vunpack.c.l.b16 %v459
        %v528 = vunpack.c.l.b16 %v460
        %v529 = vunpack.c.l.b16 %v461
        %v530 = vunpack.c.l.b16 %v462
        %v531 = vunpack.c.l.b16 %v463
        %v532 = vunpack.c.l.b16 %v464
        %v533 = vpack.c.b16 %v502, %v501
        %v534 = vpack.c.b16 %v504, %v503
        %v535 = vpack.c.b16 %v506, %v505
        %v536 = vpack.c.b16 %v508, %v507
        %v537 = vpack.c.b16 %v510, %v509
        %v538 = vpack.c.b16 %v512, %v511
        %v539 = vpack.c.b16 %v514, %v513
        %v540 = vpack.c.b16 %v516, %v515
        %v541 = vpack.c.b16 %v518, %v517
        %v542 = vpack.c.b16 %v520, %v519
        %v543 = vpack.c.b16 %v522, %v521
        %v544 = vpack.c.b16 %v524, %v523
        %v545 = vpack.c.b16 %v526, %v525
        %v546 = vpack.c.b16 %v528, %v527
        %v547 = vpack.c.b16 %v530, %v529
        %v548 = vpack.c.b16 %v532, %v531
        %565 = vmatprep.subr.bf16.mxu0 0
        %566 = vmatpush1.bf16.msra.mxu0 %v540
        %567 = vmatprep.subr.bf16.mxu0 0
        %568 = vmatpush1.bf16.msra.mxu0 %v539
        %569 = vmatprep.subr.bf16.mxu0 0
        %570 = vmatpush1.bf16.msra.mxu0 %v538
        %571 = vmatprep.subr.bf16.mxu0 0
        %572 = vmatpush1.bf16.msra.mxu0 %v537
        %573 = vmatprep.subr.bf16.mxu0 0
        %574 = vmatpush1.bf16.msra.mxu0 %v536
        %575 = vmatprep.subr.bf16.mxu0 0
        %576 = vmatpush1.bf16.msra.mxu0 %v535
        %577 = vmatprep.subr.bf16.mxu0 0
        %578 = vmatpush1.bf16.msra.mxu0 %v534
        %579 = vmatprep.subr.bf16.mxu0 0
        %580 = vmatpush1.bf16.msra.mxu0 %v533
        %581 = vmatprep.subr.bf16.mxu0 0
        %582 = vmatpush2.bf16.msra.mxu0 %v548
        %583 = vmatprep.subr.bf16.mxu0 0
        %584 = vmatpush2.bf16.msra.mxu0 %v547
        %585 = vmatprep.subr.bf16.mxu0 0
        %586 = vmatpush2.bf16.msra.mxu0 %v546
        %587 = vmatprep.subr.bf16.mxu0 0
        %588 = vmatpush2.bf16.msra.mxu0 %v545
        %589 = vmatprep.subr.bf16.mxu0 0
        %590 = vmatpush2.bf16.msra.mxu0 %v544
        %591 = vmatprep.subr.bf16.mxu0 0
        %592 = vmatpush2.bf16.msra.mxu0 %v543
        %593 = vmatprep.subr.bf16.mxu0 0
        %594 = vmatpush2.bf16.msra.mxu0 %v542
        %595 = vmatprep.subr.bf16.mxu0 0
        %596 = vmatpush2.bf16.msra.mxu0 %v541
        %597 = vmatprep.mubr.bf16.mxu0 %v397
        %598 = vmatmul.mubr.bf16.gmra.mxu0 %v396
        %v599 = vpop.f32.mrf.mxu0
        %v600 = vadd.f32 %v468, %v599
        %v601 = vpop.f32.mrf.mxu0
        %v602 = vpop.f32.mrf.mxu0
        %v603 = vadd.f32 %v468, %v602
        %v604 = vpop.f32.mrf.mxu0
        %605 = vmatprep.mubr.bf16.mxu0 %v399
        %606 = vmatmul.mubr.bf16.gmra.mxu0 %v398
        %v607 = vpop.f32.mrf.mxu0
        %v608 = vadd.f32 %v468, %v607
        %v609 = vpop.f32.mrf.mxu0
        %v610 = vpop.f32.mrf.mxu0
        %v611 = vadd.f32 %v468, %v610
        %v612 = vpop.f32.mrf.mxu0
        %613 = vmatprep.mubr.bf16.mxu0 %v401
        %614 = vmatmul.mubr.bf16.gmra.mxu0 %v400
        %v615 = vpop.f32.mrf.mxu0
        %v616 = vadd.f32 %v468, %v615
        %v617 = vpop.f32.mrf.mxu0
        %v618 = vpop.f32.mrf.mxu0
        %v619 = vadd.f32 %v468, %v618
        %v620 = vpop.f32.mrf.mxu0
        %621 = vmatprep.mubr.bf16.mxu0 %v403
        %622 = vmatmul.mubr.bf16.gmra.mxu0 %v402
        %v623 = vpop.f32.mrf.mxu0
        %v624 = vadd.f32 %v468, %v623
        %v625 = vpop.f32.mrf.mxu0
        %v626 = vpop.f32.mrf.mxu0
        %v627 = vadd.f32 %v468, %v626
        %v628 = vpop.f32.mrf.mxu0
        %629 = vmatprep.mubr.bf16.mxu0 %v405
        %630 = vmatmul.mubr.bf16.gmra.mxu0 %v404
        %v631 = vpop.f32.mrf.mxu0
        %v632 = vadd.f32 %v468, %v631
        %v633 = vpop.f32.mrf.mxu0
        %v634 = vpop.f32.mrf.mxu0
        %v635 = vadd.f32 %v468, %v634
        %v636 = vpop.f32.mrf.mxu0
        %637 = vmatprep.mubr.bf16.mxu0 %v407
        %638 = vmatmul.mubr.bf16.gmra.mxu0 %v406
        %v639 = vpop.f32.mrf.mxu0
        %v640 = vadd.f32 %v468, %v639
        %v641 = vpop.f32.mrf.mxu0
        %v642 = vpop.f32.mrf.mxu0
        %v643 = vadd.f32 %v468, %v642
        %v644 = vpop.f32.mrf.mxu0
        %645 = vmatprep.mubr.bf16.mxu0 %v409
        %646 = vmatmul.mubr.bf16.gmra.mxu0 %v408
        %v647 = vpop.f32.mrf.mxu0
        %v648 = vadd.f32 %v468, %v647
        %v649 = vpop.f32.mrf.mxu0
        %v650 = vpop.f32.mrf.mxu0
        %v651 = vadd.f32 %v468, %v650
        %v652 = vpop.f32.mrf.mxu0
        %653 = vmatprep.mubr.bf16.mxu0 %v411
        %654 = vmatmul.mubr.bf16.gmra.mxu0 %v410
        %v655 = vpop.f32.mrf.mxu0
        %v656 = vadd.f32 %v468, %v655
        %v657 = vpop.f32.mrf.mxu0
        %v658 = vpop.f32.mrf.mxu0
        %v659 = vadd.f32 %v468, %v658
        %v660 = vpop.f32.mrf.mxu0
        %661 = vmatprep.mubr.bf16.mxu0 %v413
        %662 = vmatmul.mubr.bf16.gmra.mxu0 %v412
        %v663 = vpop.f32.mrf.mxu0
        %v664 = vadd.f32 %v468, %v663
        %v665 = vpop.f32.mrf.mxu0
        %v666 = vpop.f32.mrf.mxu0
        %v667 = vadd.f32 %v468, %v666
        %v668 = vpop.f32.mrf.mxu0
        %669 = vmatprep.mubr.bf16.mxu0 %v415
        %670 = vmatmul.mubr.bf16.gmra.mxu0 %v414
        %v671 = vpop.f32.mrf.mxu0
        %v672 = vadd.f32 %v468, %v671
        %v673 = vpop.f32.mrf.mxu0
        %v674 = vpop.f32.mrf.mxu0
        %v675 = vadd.f32 %v468, %v674
        %v676 = vpop.f32.mrf.mxu0
        %677 = vmatprep.mubr.bf16.mxu0 %v417
        %678 = vmatmul.mubr.bf16.gmra.mxu0 %v416
        %v679 = vpop.f32.mrf.mxu0
        %v680 = vadd.f32 %v468, %v679
        %v681 = vpop.f32.mrf.mxu0
        %v682 = vpop.f32.mrf.mxu0
        %v683 = vadd.f32 %v468, %v682
        %v684 = vpop.f32.mrf.mxu0
        %685 = vmatprep.mubr.bf16.mxu0 %v419
        %686 = vmatmul.mubr.bf16.gmra.mxu0 %v418
        %v687 = vpop.f32.mrf.mxu0
        %v688 = vadd.f32 %v468, %v687
        %v689 = vpop.f32.mrf.mxu0
        %v690 = vpop.f32.mrf.mxu0
        %v691 = vadd.f32 %v468, %v690
        %v692 = vpop.f32.mrf.mxu0
        %693 = vmatprep.mubr.bf16.mxu0 %v421
        %694 = vmatmul.mubr.bf16.gmra.mxu0 %v420
        %v695 = vpop.f32.mrf.mxu0
        %v696 = vadd.f32 %v468, %v695
        %v697 = vpop.f32.mrf.mxu0
        %v698 = vpop.f32.mrf.mxu0
        %v699 = vadd.f32 %v468, %v698
        %v700 = vpop.f32.mrf.mxu0
        %701 = vmatprep.mubr.bf16.mxu0 %v423
        %702 = vmatmul.mubr.bf16.gmra.mxu0 %v422
        %v703 = vpop.f32.mrf.mxu0
        %v704 = vadd.f32 %v468, %v703
        %v705 = vpop.f32.mrf.mxu0
        %v706 = vpop.f32.mrf.mxu0
        %v707 = vadd.f32 %v468, %v706
        %v708 = vpop.f32.mrf.mxu0
        %709 = vmatprep.mubr.bf16.mxu0 %v425
        %710 = vmatmul.mubr.bf16.gmra.mxu0 %v424
        %v711 = vpop.f32.mrf.mxu0
        %v712 = vadd.f32 %v468, %v711
        %v713 = vpop.f32.mrf.mxu0
        %v714 = vpop.f32.mrf.mxu0
        %v715 = vadd.f32 %v468, %v714
        %v716 = vpop.f32.mrf.mxu0
        %717 = vmatprep.mubr.bf16.mxu0 %v427
        %718 = vmatmul.mubr.bf16.gmra.mxu0 %v426
        %v719 = vpop.f32.mrf.mxu0
        %v720 = vadd.f32 %v468, %v719
        %v721 = vpop.f32.mrf.mxu0
        %v722 = vpop.f32.mrf.mxu0
        %v723 = vadd.f32 %v468, %v722
        %v724 = vpop.f32.mrf.mxu0
        %725 = vdwg.mxu0
        %v726 = vmax.f32 %v600, 0.0
        %v727 = vmax.f32 %v603, 0.0
        %v728 = vmax.f32 %v608, 0.0
        %v729 = vmax.f32 %v611, 0.0
        %v730 = vmax.f32 %v616, 0.0
        %v731 = vmax.f32 %v619, 0.0
        %v732 = vmax.f32 %v624, 0.0
        %v733 = vmax.f32 %v627, 0.0
        %v734 = vmax.f32 %v632, 0.0
        %v735 = vmax.f32 %v635, 0.0
        %v736 = vmax.f32 %v640, 0.0
        %v737 = vmax.f32 %v643, 0.0
        %v738 = vmax.f32 %v648, 0.0
        %v739 = vmax.f32 %v651, 0.0
        %v740 = vmax.f32 %v656, 0.0
        %v741 = vmax.f32 %v659, 0.0
        %v742 = vmax.f32 %v664, 0.0
        %v743 = vmax.f32 %v667, 0.0
        %v744 = vmax.f32 %v672, 0.0
        %v745 = vmax.f32 %v675, 0.0
        %v746 = vmax.f32 %v680, 0.0
        %v747 = vmax.f32 %v683, 0.0
        %v748 = vmax.f32 %v688, 0.0
        %v749 = vmax.f32 %v691, 0.0
        %v750 = vmax.f32 %v696, 0.0
        %v751 = vmax.f32 %v699, 0.0
        %v752 = vmax.f32 %v704, 0.0
        %v753 = vmax.f32 %v707, 0.0
        %v754 = vmax.f32 %v712, 0.0
        %v755 = vmax.f32 %v715, 0.0
        %v756 = vmax.f32 %v720, 0.0
        %v757 = vmax.f32 %v723, 0.0
        %v758 = vpack.c.bf16 %v727, %v726
        %v759 = vpack.c.bf16 %v729, %v728
        %v760 = vpack.c.bf16 %v731, %v730
        %v761 = vpack.c.bf16 %v733, %v732
        %v762 = vpack.c.bf16 %v735, %v734
        %v763 = vpack.c.bf16 %v737, %v736
        %v764 = vpack.c.bf16 %v739, %v738
        %v765 = vpack.c.bf16 %v741, %v740
        %v766 = vpack.c.bf16 %v743, %v742
        %v767 = vpack.c.bf16 %v745, %v744
        %v768 = vpack.c.bf16 %v747, %v746
        %v769 = vpack.c.bf16 %v749, %v748
        %v770 = vpack.c.bf16 %v751, %v750
        %v771 = vpack.c.bf16 %v753, %v752
        %v772 = vpack.c.bf16 %v755, %v754
        %v773 = vpack.c.bf16 %v757, %v756
        %v774 = vld [vmem:[#allocation7] sm:$0xf]
        %v775 = vld [vmem:[#allocation7 + $0x4] sm:$0xf]
        %v776 = vld [vmem:[#allocation7 + $0x8] sm:$0xf]
        %v777 = vld [vmem:[#allocation7 + $0xc] sm:$0xf]
        %v778 = vld [vmem:[#allocation7 + $0x10] sm:$0xf]
        %v779 = vld [vmem:[#allocation7 + $0x14] sm:$0xf]
        %v780 = vld [vmem:[#allocation7 + $0x18] sm:$0xf]
        %v781 = vld [vmem:[#allocation7 + $0x1c] sm:$0xf]
        %v782 = vld [vmem:[#allocation7 + $0x20] sm:$0xf]
        %v783 = vld [vmem:[#allocation7 + $0x24] sm:$0xf]
        %v784 = vld [vmem:[#allocation7 + $0x28] sm:$0xf]
        %v785 = vld [vmem:[#allocation7 + $0x2c] sm:$0xf]
        %v786 = vld [vmem:[#allocation7 + $0x30] sm:$0xf]
        %v787 = vld [vmem:[#allocation7 + $0x34] sm:$0xf]
        %v788 = vld [vmem:[#allocation7 + $0x38] sm:$0xf]
        %v789 = vld [vmem:[#allocation7 + $0x3c] sm:$0xf]
        %v790 = vlaneseq
        %v791 = vshrl.u32 %v790, 7
        %v792 = vsub.s32 0, %v791
        %v793 = vrot.slane %v429, %v792
        %v810 = vunpack.c.l.b16 %v774
        %v811 = vunpack.c.l.b16 %v775
        %v812 = vunpack.c.l.b16 %v776
        %v813 = vunpack.c.l.b16 %v777
        %v814 = vunpack.c.l.b16 %v778
        %v815 = vunpack.c.l.b16 %v779
        %v816 = vunpack.c.l.b16 %v780
        %v817 = vunpack.c.l.b16 %v781
        %v818 = vunpack.c.l.b16 %v782
        %v819 = vunpack.c.l.b16 %v783
        %v820 = vunpack.c.l.b16 %v784
        %v821 = vunpack.c.l.b16 %v785
        %v822 = vunpack.c.l.b16 %v786
        %v823 = vunpack.c.l.b16 %v787
        %v824 = vunpack.c.l.b16 %v788
        %v825 = vunpack.c.l.b16 %v789
        %v826 = vpack.c.b16 %v811, %v810
        %v827 = vpack.c.b16 %v813, %v812
        %v828 = vpack.c.b16 %v815, %v814
        %v829 = vpack.c.b16 %v817, %v816
        %v830 = vpack.c.b16 %v819, %v818
        %v831 = vpack.c.b16 %v821, %v820
        %v832 = vpack.c.b16 %v823, %v822
        %v833 = vpack.c.b16 %v825, %v824
        %842 = vmatprep.subr.bf16.mxu0 0
        %843 = vmatpush1.bf16.msra.mxu0 %v833
        %844 = vmatprep.subr.bf16.mxu0 0
        %845 = vmatpush1.bf16.msra.mxu0 %v832
        %846 = vmatprep.subr.bf16.mxu0 0
        %847 = vmatpush1.bf16.msra.mxu0 %v831
        %848 = vmatprep.subr.bf16.mxu0 0
        %849 = vmatpush1.bf16.msra.mxu0 %v830
        %850 = vmatprep.subr.bf16.mxu0 0
        %851 = vmatpush1.bf16.msra.mxu0 %v829
        %852 = vmatprep.subr.bf16.mxu0 0
        %853 = vmatpush1.bf16.msra.mxu0 %v828
        %854 = vmatprep.subr.bf16.mxu0 0
        %855 = vmatpush1.bf16.msra.mxu0 %v827
        %856 = vmatprep.subr.bf16.mxu0 0
        %857 = vmatpush1.bf16.msra.mxu0 %v826
        %858 = vmatprep.subr.bf16.mxu0 0
        %859 = vmatpush2.bf16.msra.mxu0 0
        %860 = vmatprep.subr.bf16.mxu0 0
        %861 = vmatpush2.bf16.msra.mxu0 0
        %862 = vmatprep.subr.bf16.mxu0 0
        %863 = vmatpush2.bf16.msra.mxu0 0
        %864 = vmatprep.subr.bf16.mxu0 0
        %865 = vmatpush2.bf16.msra.mxu0 0
        %866 = vmatprep.subr.bf16.mxu0 0
        %867 = vmatpush2.bf16.msra.mxu0 0
        %868 = vmatprep.subr.bf16.mxu0 0
        %869 = vmatpush2.bf16.msra.mxu0 0
        %870 = vmatprep.subr.bf16.mxu0 0
        %871 = vmatpush2.bf16.msra.mxu0 0
        %872 = vmatprep.subr.bf16.mxu0 0
        %873 = vmatpush2.bf16.msra.mxu0 0
        %874 = vmatprep.mubr.bf16.mxu0 0
        %875 = vmatmul.mubr.bf16.gmra.mxu0 %v758
        %v876 = vpop.f32.mrf.mxu0
        %v877 = vadd.f32 %v793, %v876
        %v878 = vpop.f32.mrf.mxu0
        %v879 = vpop.f32.mrf.mxu0
        %v880 = vadd.f32 %v793, %v879
        %v881 = vpop.f32.mrf.mxu0
        %882 = vmatprep.mubr.bf16.mxu0 0
        %883 = vmatmul.mubr.bf16.gmra.mxu0 %v759
        %v884 = vpop.f32.mrf.mxu0
        %v885 = vadd.f32 %v793, %v884
        %v886 = vpop.f32.mrf.mxu0
        %v887 = vpop.f32.mrf.mxu0
        %v888 = vadd.f32 %v793, %v887
        %v889 = vpop.f32.mrf.mxu0
        %890 = vmatprep.mubr.bf16.mxu0 0
        %891 = vmatmul.mubr.bf16.gmra.mxu0 %v760
        %v892 = vpop.f32.mrf.mxu0
        %v893 = vadd.f32 %v793, %v892
        %v894 = vpop.f32.mrf.mxu0
        %v895 = vpop.f32.mrf.mxu0
        %v896 = vadd.f32 %v793, %v895
        %v897 = vpop.f32.mrf.mxu0
        %898 = vmatprep.mubr.bf16.mxu0 0
        %899 = vmatmul.mubr.bf16.gmra.mxu0 %v761
        %v900 = vpop.f32.mrf.mxu0
        %v901 = vadd.f32 %v793, %v900
        %v902 = vpop.f32.mrf.mxu0
        %v903 = vpop.f32.mrf.mxu0
        %v904 = vadd.f32 %v793, %v903
        %v905 = vpop.f32.mrf.mxu0
        %906 = vmatprep.mubr.bf16.mxu0 0
        %907 = vmatmul.mubr.bf16.gmra.mxu0 %v762
        %v908 = vpop.f32.mrf.mxu0
        %v909 = vadd.f32 %v793, %v908
        %v910 = vpop.f32.mrf.mxu0
        %v911 = vpop.f32.mrf.mxu0
        %v912 = vadd.f32 %v793, %v911
        %v913 = vpop.f32.mrf.mxu0
        %914 = vmatprep.mubr.bf16.mxu0 0
        %915 = vmatmul.mubr.bf16.gmra.mxu0 %v763
        %v916 = vpop.f32.mrf.mxu0
        %v917 = vadd.f32 %v793, %v916
        %v918 = vpop.f32.mrf.mxu0
        %v919 = vpop.f32.mrf.mxu0
        %v920 = vadd.f32 %v793, %v919
        %v921 = vpop.f32.mrf.mxu0
        %922 = vmatprep.mubr.bf16.mxu0 0
        %923 = vmatmul.mubr.bf16.gmra.mxu0 %v764
        %v924 = vpop.f32.mrf.mxu0
        %v925 = vadd.f32 %v793, %v924
        %v926 = vpop.f32.mrf.mxu0
        %v927 = vpop.f32.mrf.mxu0
        %v928 = vadd.f32 %v793, %v927
        %v929 = vpop.f32.mrf.mxu0
        %930 = vmatprep.mubr.bf16.mxu0 0
        %931 = vmatmul.mubr.bf16.gmra.mxu0 %v765
        %v932 = vpop.f32.mrf.mxu0
        %v933 = vadd.f32 %v793, %v932
        %v934 = vpop.f32.mrf.mxu0
        %v935 = vpop.f32.mrf.mxu0
        %v936 = vadd.f32 %v793, %v935
        %v937 = vpop.f32.mrf.mxu0
        %938 = vmatprep.mubr.bf16.mxu0 0
        %939 = vmatmul.mubr.bf16.gmra.mxu0 %v766
        %v940 = vpop.f32.mrf.mxu0
        %v941 = vadd.f32 %v793, %v940
        %v942 = vpop.f32.mrf.mxu0
        %v943 = vpop.f32.mrf.mxu0
        %v944 = vadd.f32 %v793, %v943
        %v945 = vpop.f32.mrf.mxu0
        %946 = vmatprep.mubr.bf16.mxu0 0
        %947 = vmatmul.mubr.bf16.gmra.mxu0 %v767
        %v948 = vpop.f32.mrf.mxu0
        %v949 = vadd.f32 %v793, %v948
        %v950 = vpop.f32.mrf.mxu0
        %v951 = vpop.f32.mrf.mxu0
        %v952 = vadd.f32 %v793, %v951
        %v953 = vpop.f32.mrf.mxu0
        %954 = vmatprep.mubr.bf16.mxu0 0
        %955 = vmatmul.mubr.bf16.gmra.mxu0 %v768
        %v956 = vpop.f32.mrf.mxu0
        %v957 = vadd.f32 %v793, %v956
        %v958 = vpop.f32.mrf.mxu0
        %v959 = vpop.f32.mrf.mxu0
        %v960 = vadd.f32 %v793, %v959
        %v961 = vpop.f32.mrf.mxu0
        %962 = vmatprep.mubr.bf16.mxu0 0
        %963 = vmatmul.mubr.bf16.gmra.mxu0 %v769
        %v964 = vpop.f32.mrf.mxu0
        %v965 = vadd.f32 %v793, %v964
        %v966 = vpop.f32.mrf.mxu0
        %v967 = vpop.f32.mrf.mxu0
        %v968 = vadd.f32 %v793, %v967
        %v969 = vpop.f32.mrf.mxu0
        %970 = vmatprep.mubr.bf16.mxu0 0
        %971 = vmatmul.mubr.bf16.gmra.mxu0 %v770
        %v972 = vpop.f32.mrf.mxu0
        %v973 = vadd.f32 %v793, %v972
        %v974 = vpop.f32.mrf.mxu0
        %v975 = vpop.f32.mrf.mxu0
        %v976 = vadd.f32 %v793, %v975
        %v977 = vpop.f32.mrf.mxu0
        %978 = vmatprep.mubr.bf16.mxu0 0
        %979 = vmatmul.mubr.bf16.gmra.mxu0 %v771
        %v980 = vpop.f32.mrf.mxu0
        %v981 = vadd.f32 %v793, %v980
        %v982 = vpop.f32.mrf.mxu0
        %v983 = vpop.f32.mrf.mxu0
        %v984 = vadd.f32 %v793, %v983
        %v985 = vpop.f32.mrf.mxu0
        %986 = vmatprep.mubr.bf16.mxu0 0
        %987 = vmatmul.mubr.bf16.gmra.mxu0 %v772
        %v988 = vpop.f32.mrf.mxu0
        %v989 = vadd.f32 %v793, %v988
        %v990 = vpop.f32.mrf.mxu0
        %v991 = vpop.f32.mrf.mxu0
        %v992 = vadd.f32 %v793, %v991
        %v993 = vpop.f32.mrf.mxu0
        %994 = vmatprep.mubr.bf16.mxu0 0
        %995 = vmatmul.mubr.bf16.gmra.mxu0 %v773
        %v996 = vpop.f32.mrf.mxu0
        %v997 = vadd.f32 %v793, %v996
        %v998 = vpop.f32.mrf.mxu0
        %v999 = vpop.f32.mrf.mxu0
        %v1000 = vadd.f32 %v793, %v999
        %v1001 = vpop.f32.mrf.mxu0
        %1002 = vdwg.mxu0
        %v1003 = vmax.f32 %v877, 0.0
        %v1004 = vmax.f32 %v880, 0.0
        %v1005 = vmax.f32 %v885, 0.0
        %v1006 = vmax.f32 %v888, 0.0
        %v1007 = vmax.f32 %v893, 0.0
        %v1008 = vmax.f32 %v896, 0.0
        %v1009 = vmax.f32 %v901, 0.0
        %v1010 = vmax.f32 %v904, 0.0
        %v1011 = vmax.f32 %v909, 0.0
        %v1012 = vmax.f32 %v912, 0.0
        %v1013 = vmax.f32 %v917, 0.0
        %v1014 = vmax.f32 %v920, 0.0
        %v1015 = vmax.f32 %v925, 0.0
        %v1016 = vmax.f32 %v928, 0.0
        %v1017 = vmax.f32 %v933, 0.0
        %v1018 = vmax.f32 %v936, 0.0
        %v1019 = vmax.f32 %v941, 0.0
        %v1020 = vmax.f32 %v944, 0.0
        %v1021 = vmax.f32 %v949, 0.0
        %v1022 = vmax.f32 %v952, 0.0
        %v1023 = vmax.f32 %v957, 0.0
        %v1024 = vmax.f32 %v960, 0.0
        %v1025 = vmax.f32 %v965, 0.0
        %v1026 = vmax.f32 %v968, 0.0
        %v1027 = vmax.f32 %v973, 0.0
        %v1028 = vmax.f32 %v976, 0.0
        %v1029 = vmax.f32 %v981, 0.0
        %v1030 = vmax.f32 %v984, 0.0
        %v1031 = vmax.f32 %v989, 0.0
        %v1032 = vmax.f32 %v992, 0.0
        %v1033 = vmax.f32 %v997, 0.0
        %v1034 = vmax.f32 %v1000, 0.0
        %v1035 = vpack.c.bf16 %v1004, %v1003
        %v1036 = vpack.c.bf16 %v1006, %v1005
        %v1037 = vpack.c.bf16 %v1008, %v1007
        %v1038 = vpack.c.bf16 %v1010, %v1009
        %v1039 = vpack.c.bf16 %v1012, %v1011
        %v1040 = vpack.c.bf16 %v1014, %v1013
        %v1041 = vpack.c.bf16 %v1016, %v1015
        %v1042 = vpack.c.bf16 %v1018, %v1017
        %v1043 = vpack.c.bf16 %v1020, %v1019
        %v1044 = vpack.c.bf16 %v1022, %v1021
        %v1045 = vpack.c.bf16 %v1024, %v1023
        %v1046 = vpack.c.bf16 %v1026, %v1025
        %v1047 = vpack.c.bf16 %v1028, %v1027
        %v1048 = vpack.c.bf16 %v1030, %v1029
        %v1049 = vpack.c.bf16 %v1032, %v1031
        %v1050 = vpack.c.bf16 %v1034, %v1033
        %v1051 = vld [vmem:[#allocation8] sm:$0xf]
        %v1052 = vld [vmem:[#allocation8 + $0x4] sm:$0xf]
        %v1053 = vld [vmem:[#allocation8 + $0x8] sm:$0xf]
        %v1054 = vld [vmem:[#allocation8 + $0xc] sm:$0xf]
        %v1055 = vld [vmem:[#allocation8 + $0x10] sm:$0xf]
        %v1056 = vld [vmem:[#allocation8 + $0x14] sm:$0xf]
        %v1057 = vld [vmem:[#allocation8 + $0x18] sm:$0xf]
        %v1058 = vld [vmem:[#allocation8 + $0x1c] sm:$0xf]
        %v1059 = vld [vmem:[#allocation8 + $0x20] sm:$0xf]
        %v1060 = vld [vmem:[#allocation8 + $0x24] sm:$0xf]
        %v1061 = vld [vmem:[#allocation8 + $0x28] sm:$0xf]
        %v1062 = vld [vmem:[#allocation8 + $0x2c] sm:$0xf]
        %v1063 = vld [vmem:[#allocation8 + $0x30] sm:$0xf]
        %v1064 = vld [vmem:[#allocation8 + $0x34] sm:$0xf]
        %v1065 = vld [vmem:[#allocation8 + $0x38] sm:$0xf]
        %v1066 = vld [vmem:[#allocation8 + $0x3c] sm:$0xf]
        %v1067 = vlaneseq
        %v1068 = vshrl.u32 %v1067, 7
        %v1069 = vsub.s32 0, %v1068
        %v1070 = vrot.slane %v430, %v1069
        %v1087 = vunpack.c.l.b16 %v1051
        %v1088 = vunpack.c.l.b16 %v1052
        %v1089 = vunpack.c.l.b16 %v1053
        %v1090 = vunpack.c.l.b16 %v1054
        %v1091 = vunpack.c.l.b16 %v1055
        %v1092 = vunpack.c.l.b16 %v1056
        %v1093 = vunpack.c.l.b16 %v1057
        %v1094 = vunpack.c.l.b16 %v1058
        %v1095 = vunpack.c.l.b16 %v1059
        %v1096 = vunpack.c.l.b16 %v1060
        %v1097 = vunpack.c.l.b16 %v1061
        %v1098 = vunpack.c.l.b16 %v1062
        %v1099 = vunpack.c.l.b16 %v1063
        %v1100 = vunpack.c.l.b16 %v1064
        %v1101 = vunpack.c.l.b16 %v1065
        %v1102 = vunpack.c.l.b16 %v1066
        %v1103 = vpack.c.b16 %v1088, %v1087
        %v1104 = vpack.c.b16 %v1090, %v1089
        %v1105 = vpack.c.b16 %v1092, %v1091
        %v1106 = vpack.c.b16 %v1094, %v1093
        %v1107 = vpack.c.b16 %v1096, %v1095
        %v1108 = vpack.c.b16 %v1098, %v1097
        %v1109 = vpack.c.b16 %v1100, %v1099
        %v1110 = vpack.c.b16 %v1102, %v1101
        %1119 = vmatprep.subr.bf16.mxu0 0
        %1120 = vmatpush1.bf16.msra.mxu0 %v1110
        %1121 = vmatprep.subr.bf16.mxu0 0
        %1122 = vmatpush1.bf16.msra.mxu0 %v1109
        %1123 = vmatprep.subr.bf16.mxu0 0
        %1124 = vmatpush1.bf16.msra.mxu0 %v1108
        %1125 = vmatprep.subr.bf16.mxu0 0
        %1126 = vmatpush1.bf16.msra.mxu0 %v1107
        %1127 = vmatprep.subr.bf16.mxu0 0
        %1128 = vmatpush1.bf16.msra.mxu0 %v1106
        %1129 = vmatprep.subr.bf16.mxu0 0
        %1130 = vmatpush1.bf16.msra.mxu0 %v1105
        %1131 = vmatprep.subr.bf16.mxu0 0
        %1132 = vmatpush1.bf16.msra.mxu0 %v1104
        %1133 = vmatprep.subr.bf16.mxu0 0
        %1134 = vmatpush1.bf16.msra.mxu0 %v1103
        %1135 = vmatprep.subr.bf16.mxu0 0
        %1136 = vmatpush2.bf16.msra.mxu0 0
        %1137 = vmatprep.subr.bf16.mxu0 0
        %1138 = vmatpush2.bf16.msra.mxu0 0
        %1139 = vmatprep.subr.bf16.mxu0 0
        %1140 = vmatpush2.bf16.msra.mxu0 0
        %1141 = vmatprep.subr.bf16.mxu0 0
        %1142 = vmatpush2.bf16.msra.mxu0 0
        %1143 = vmatprep.subr.bf16.mxu0 0
        %1144 = vmatpush2.bf16.msra.mxu0 0
        %1145 = vmatprep.subr.bf16.mxu0 0
        %1146 = vmatpush2.bf16.msra.mxu0 0
        %1147 = vmatprep.subr.bf16.mxu0 0
        %1148 = vmatpush2.bf16.msra.mxu0 0
        %1149 = vmatprep.subr.bf16.mxu0 0
        %1150 = vmatpush2.bf16.msra.mxu0 0
        %1151 = vmatprep.mubr.bf16.mxu0 0
        %1152 = vmatmul.mubr.bf16.gmra.mxu0 %v1035
        %v1153 = vpop.f32.mrf.mxu0
        %v1154 = vadd.f32 %v1070, %v1153
        %v1155 = vpop.f32.mrf.mxu0
        %v1156 = vpop.f32.mrf.mxu0
        %v1157 = vadd.f32 %v1070, %v1156
        %v1158 = vpop.f32.mrf.mxu0
        %1159 = vmatprep.mubr.bf16.mxu0 0
        %1160 = vmatmul.mubr.bf16.gmra.mxu0 %v1036
        %v1161 = vpop.f32.mrf.mxu0
        %v1162 = vadd.f32 %v1070, %v1161
        %v1163 = vpop.f32.mrf.mxu0
        %v1164 = vpop.f32.mrf.mxu0
        %v1165 = vadd.f32 %v1070, %v1164
        %v1166 = vpop.f32.mrf.mxu0
        %1167 = vmatprep.mubr.bf16.mxu0 0
        %1168 = vmatmul.mubr.bf16.gmra.mxu0 %v1037
        %v1169 = vpop.f32.mrf.mxu0
        %v1170 = vadd.f32 %v1070, %v1169
        %v1171 = vpop.f32.mrf.mxu0
        %v1172 = vpop.f32.mrf.mxu0
        %v1173 = vadd.f32 %v1070, %v1172
        %v1174 = vpop.f32.mrf.mxu0
        %1175 = vmatprep.mubr.bf16.mxu0 0
        %1176 = vmatmul.mubr.bf16.gmra.mxu0 %v1038
        %v1177 = vpop.f32.mrf.mxu0
        %v1178 = vadd.f32 %v1070, %v1177
        %v1179 = vpop.f32.mrf.mxu0
        %v1180 = vpop.f32.mrf.mxu0
        %v1181 = vadd.f32 %v1070, %v1180
        %v1182 = vpop.f32.mrf.mxu0
        %1183 = vmatprep.mubr.bf16.mxu0 0
        %1184 = vmatmul.mubr.bf16.gmra.mxu0 %v1039
        %v1185 = vpop.f32.mrf.mxu0
        %v1186 = vadd.f32 %v1070, %v1185
        %v1187 = vpop.f32.mrf.mxu0
        %v1188 = vpop.f32.mrf.mxu0
        %v1189 = vadd.f32 %v1070, %v1188
        %v1190 = vpop.f32.mrf.mxu0
        %1191 = vmatprep.mubr.bf16.mxu0 0
        %1192 = vmatmul.mubr.bf16.gmra.mxu0 %v1040
        %v1193 = vpop.f32.mrf.mxu0
        %v1194 = vadd.f32 %v1070, %v1193
        %v1195 = vpop.f32.mrf.mxu0
        %v1196 = vpop.f32.mrf.mxu0
        %v1197 = vadd.f32 %v1070, %v1196
        %v1198 = vpop.f32.mrf.mxu0
        %1199 = vmatprep.mubr.bf16.mxu0 0
        %1200 = vmatmul.mubr.bf16.gmra.mxu0 %v1041
        %v1201 = vpop.f32.mrf.mxu0
        %v1202 = vadd.f32 %v1070, %v1201
        %v1203 = vpop.f32.mrf.mxu0
        %v1204 = vpop.f32.mrf.mxu0
        %v1205 = vadd.f32 %v1070, %v1204
        %v1206 = vpop.f32.mrf.mxu0
        %1207 = vmatprep.mubr.bf16.mxu0 0
        %1208 = vmatmul.mubr.bf16.gmra.mxu0 %v1042
        %v1209 = vpop.f32.mrf.mxu0
        %v1210 = vadd.f32 %v1070, %v1209
        %v1211 = vpop.f32.mrf.mxu0
        %v1212 = vpop.f32.mrf.mxu0
        %v1213 = vadd.f32 %v1070, %v1212
        %v1214 = vpop.f32.mrf.mxu0
        %1215 = vmatprep.mubr.bf16.mxu0 0
        %1216 = vmatmul.mubr.bf16.gmra.mxu0 %v1043
        %v1217 = vpop.f32.mrf.mxu0
        %v1218 = vadd.f32 %v1070, %v1217
        %v1219 = vpop.f32.mrf.mxu0
        %v1220 = vpop.f32.mrf.mxu0
        %v1221 = vadd.f32 %v1070, %v1220
        %v1222 = vpop.f32.mrf.mxu0
        %1223 = vmatprep.mubr.bf16.mxu0 0
        %1224 = vmatmul.mubr.bf16.gmra.mxu0 %v1044
        %v1225 = vpop.f32.mrf.mxu0
        %v1226 = vadd.f32 %v1070, %v1225
        %v1227 = vpop.f32.mrf.mxu0
        %v1228 = vpop.f32.mrf.mxu0
        %v1229 = vadd.f32 %v1070, %v1228
        %v1230 = vpop.f32.mrf.mxu0
        %1231 = vmatprep.mubr.bf16.mxu0 0
        %1232 = vmatmul.mubr.bf16.gmra.mxu0 %v1045
        %v1233 = vpop.f32.mrf.mxu0
        %v1234 = vadd.f32 %v1070, %v1233
        %v1235 = vpop.f32.mrf.mxu0
        %v1236 = vpop.f32.mrf.mxu0
        %v1237 = vadd.f32 %v1070, %v1236
        %v1238 = vpop.f32.mrf.mxu0
        %1239 = vmatprep.mubr.bf16.mxu0 0
        %1240 = vmatmul.mubr.bf16.gmra.mxu0 %v1046
        %v1241 = vpop.f32.mrf.mxu0
        %v1242 = vadd.f32 %v1070, %v1241
        %v1243 = vpop.f32.mrf.mxu0
        %v1244 = vpop.f32.mrf.mxu0
        %v1245 = vadd.f32 %v1070, %v1244
        %v1246 = vpop.f32.mrf.mxu0
        %1247 = vmatprep.mubr.bf16.mxu0 0
        %1248 = vmatmul.mubr.bf16.gmra.mxu0 %v1047
        %v1249 = vpop.f32.mrf.mxu0
        %v1250 = vadd.f32 %v1070, %v1249
        %v1251 = vpop.f32.mrf.mxu0
        %v1252 = vpop.f32.mrf.mxu0
        %v1253 = vadd.f32 %v1070, %v1252
        %v1254 = vpop.f32.mrf.mxu0
        %1255 = vmatprep.mubr.bf16.mxu0 0
        %1256 = vmatmul.mubr.bf16.gmra.mxu0 %v1048
        %v1257 = vpop.f32.mrf.mxu0
        %v1258 = vadd.f32 %v1070, %v1257
        %v1259 = vpop.f32.mrf.mxu0
        %v1260 = vpop.f32.mrf.mxu0
        %v1261 = vadd.f32 %v1070, %v1260
        %v1262 = vpop.f32.mrf.mxu0
        %1263 = vmatprep.mubr.bf16.mxu0 0
        %1264 = vmatmul.mubr.bf16.gmra.mxu0 %v1049
        %v1265 = vpop.f32.mrf.mxu0
        %v1266 = vadd.f32 %v1070, %v1265
        %v1267 = vpop.f32.mrf.mxu0
        %v1268 = vpop.f32.mrf.mxu0
        %v1269 = vadd.f32 %v1070, %v1268
        %v1270 = vpop.f32.mrf.mxu0
        %1271 = vmatprep.mubr.bf16.mxu0 0
        %1272 = vmatmul.mubr.bf16.gmra.mxu0 %v1050
        %v1273 = vpop.f32.mrf.mxu0
        %v1274 = vadd.f32 %v1070, %v1273
        %v1275 = vpop.f32.mrf.mxu0
        %v1276 = vpop.f32.mrf.mxu0
        %v1277 = vadd.f32 %v1070, %v1276
        %v1278 = vpop.f32.mrf.mxu0
        %1279 = vdwg.mxu0
        %v1280 = vmax.f32 %v1154, 0.0
        %v1281 = vmax.f32 %v1157, 0.0
        %v1282 = vmax.f32 %v1162, 0.0
        %v1283 = vmax.f32 %v1165, 0.0
        %v1284 = vmax.f32 %v1170, 0.0
        %v1285 = vmax.f32 %v1173, 0.0
        %v1286 = vmax.f32 %v1178, 0.0
        %v1287 = vmax.f32 %v1181, 0.0
        %v1288 = vmax.f32 %v1186, 0.0
        %v1289 = vmax.f32 %v1189, 0.0
        %v1290 = vmax.f32 %v1194, 0.0
        %v1291 = vmax.f32 %v1197, 0.0
        %v1292 = vmax.f32 %v1202, 0.0
        %v1293 = vmax.f32 %v1205, 0.0
        %v1294 = vmax.f32 %v1210, 0.0
        %v1295 = vmax.f32 %v1213, 0.0
        %v1296 = vmax.f32 %v1218, 0.0
        %v1297 = vmax.f32 %v1221, 0.0
        %v1298 = vmax.f32 %v1226, 0.0
        %v1299 = vmax.f32 %v1229, 0.0
        %v1300 = vmax.f32 %v1234, 0.0
        %v1301 = vmax.f32 %v1237, 0.0
        %v1302 = vmax.f32 %v1242, 0.0
        %v1303 = vmax.f32 %v1245, 0.0
        %v1304 = vmax.f32 %v1250, 0.0
        %v1305 = vmax.f32 %v1253, 0.0
        %v1306 = vmax.f32 %v1258, 0.0
        %v1307 = vmax.f32 %v1261, 0.0
        %v1308 = vmax.f32 %v1266, 0.0
        %v1309 = vmax.f32 %v1269, 0.0
        %v1310 = vmax.f32 %v1274, 0.0
        %v1311 = vmax.f32 %v1277, 0.0
        %v1312 = vpack.c.bf16 %v1281, %v1280
        %v1313 = vpack.c.bf16 %v1283, %v1282
        %v1314 = vpack.c.bf16 %v1285, %v1284
        %v1315 = vpack.c.bf16 %v1287, %v1286
        %v1316 = vpack.c.bf16 %v1289, %v1288
        %v1317 = vpack.c.bf16 %v1291, %v1290
        %v1318 = vpack.c.bf16 %v1293, %v1292
        %v1319 = vpack.c.bf16 %v1295, %v1294
        %v1320 = vpack.c.bf16 %v1297, %v1296
        %v1321 = vpack.c.bf16 %v1299, %v1298
        %v1322 = vpack.c.bf16 %v1301, %v1300
        %v1323 = vpack.c.bf16 %v1303, %v1302
        %v1324 = vpack.c.bf16 %v1305, %v1304
        %v1325 = vpack.c.bf16 %v1307, %v1306
        %v1326 = vpack.c.bf16 %v1309, %v1308
        %v1327 = vpack.c.bf16 %v1311, %v1310
        %v1328 = vld [vmem:[#allocation10] sm:$0xff]
        %v1329 = vld [vmem:[#allocation10 + $0x8] sm:$0xff]
        %v1330 = vld [vmem:[#allocation10 + $0x10] sm:$0xff]
        %v1331 = vld [vmem:[#allocation10 + $0x18] sm:$0xff]
        %v1332 = vld [vmem:[#allocation10 + $0x20] sm:$0xff]
        %v1333 = vld [vmem:[#allocation10 + $0x28] sm:$0xff]
        %v1334 = vld [vmem:[#allocation10 + $0x30] sm:$0xff]
        %v1335 = vld [vmem:[#allocation10 + $0x38] sm:$0xff]
        %v1336 = vld [vmem:[#allocation10 + $0x40] sm:$0xff]
        %v1337 = vld [vmem:[#allocation10 + $0x48] sm:$0xff]
        %v1338 = vld [vmem:[#allocation10 + $0x50] sm:$0xff]
        %v1339 = vld [vmem:[#allocation10 + $0x58] sm:$0xff]
        %v1340 = vld [vmem:[#allocation10 + $0x60] sm:$0xff]
        %v1341 = vld [vmem:[#allocation10 + $0x68] sm:$0xff]
        %v1342 = vld [vmem:[#allocation10 + $0x70] sm:$0xff]
        %v1343 = vld [vmem:[#allocation10 + $0x78] sm:$0xff]
        %v1345 = vlaneseq
        %v1346 = vshrl.u32 %v1345, 7
        %v1347 = vsub.s32 0, %v1346
        %v1348 = vrot.slane %v432, %v1347
        %v1349 = vlaneseq
        %v1350 = vshrl.u32 %v1349, 7
        %v1351 = vsub.s32 1, %v1350
        %v1352 = vrot.slane %v432, %v1351
        %v1371 = vunpack.c.l.b16 %v1328
        %v1372 = vunpack.c.h.b16 %v1328
        %v1373 = vunpack.c.l.b16 %v1329
        %v1374 = vunpack.c.h.b16 %v1329
        %v1375 = vunpack.c.l.b16 %v1330
        %v1376 = vunpack.c.h.b16 %v1330
        %v1377 = vunpack.c.l.b16 %v1331
        %v1378 = vunpack.c.h.b16 %v1331
        %v1379 = vunpack.c.l.b16 %v1332
        %v1380 = vunpack.c.h.b16 %v1332
        %v1381 = vunpack.c.l.b16 %v1333
        %v1382 = vunpack.c.h.b16 %v1333
        %v1383 = vunpack.c.l.b16 %v1334
        %v1384 = vunpack.c.h.b16 %v1334
        %v1385 = vunpack.c.l.b16 %v1335
        %v1386 = vunpack.c.h.b16 %v1335
        %v1387 = vunpack.c.l.b16 %v1336
        %v1388 = vunpack.c.h.b16 %v1336
        %v1389 = vunpack.c.l.b16 %v1337
        %v1390 = vunpack.c.h.b16 %v1337
        %v1391 = vunpack.c.l.b16 %v1338
        %v1392 = vunpack.c.h.b16 %v1338
        %v1393 = vunpack.c.l.b16 %v1339
        %v1394 = vunpack.c.h.b16 %v1339
        %v1395 = vunpack.c.l.b16 %v1340
        %v1396 = vunpack.c.h.b16 %v1340
        %v1397 = vunpack.c.l.b16 %v1341
        %v1398 = vunpack.c.h.b16 %v1341
        %v1399 = vunpack.c.l.b16 %v1342
        %v1400 = vunpack.c.h.b16 %v1342
        %v1401 = vunpack.c.l.b16 %v1343
        %v1402 = vunpack.c.h.b16 %v1343
        %v1403 = vpack.c.b16 %v1373, %v1371
        %v1404 = vpack.c.b16 %v1374, %v1372
        %v1405 = vpack.c.b16 %v1377, %v1375
        %v1406 = vpack.c.b16 %v1378, %v1376
        %v1407 = vpack.c.b16 %v1381, %v1379
        %v1408 = vpack.c.b16 %v1382, %v1380
        %v1409 = vpack.c.b16 %v1385, %v1383
        %v1410 = vpack.c.b16 %v1386, %v1384
        %v1411 = vpack.c.b16 %v1389, %v1387
        %v1412 = vpack.c.b16 %v1390, %v1388
        %v1413 = vpack.c.b16 %v1393, %v1391
        %v1414 = vpack.c.b16 %v1394, %v1392
        %v1415 = vpack.c.b16 %v1397, %v1395
        %v1416 = vpack.c.b16 %v1398, %v1396
        %v1417 = vpack.c.b16 %v1401, %v1399
        %v1418 = vpack.c.b16 %v1402, %v1400
        %1435 = vmatprep.subr.bf16.mxu0 %v1418
        %1436 = vmatpush1.bf16.msra.mxu0 %v1417
        %1437 = vmatprep.subr.bf16.mxu0 %v1416
        %1438 = vmatpush1.bf16.msra.mxu0 %v1415
        %1439 = vmatprep.subr.bf16.mxu0 %v1414
        %1440 = vmatpush1.bf16.msra.mxu0 %v1413
        %1441 = vmatprep.subr.bf16.mxu0 %v1412
        %1442 = vmatpush1.bf16.msra.mxu0 %v1411
        %1443 = vmatprep.subr.bf16.mxu0 %v1410
        %1444 = vmatpush1.bf16.msra.mxu0 %v1409
        %1445 = vmatprep.subr.bf16.mxu0 %v1408
        %1446 = vmatpush1.bf16.msra.mxu0 %v1407
        %1447 = vmatprep.subr.bf16.mxu0 %v1406
        %1448 = vmatpush1.bf16.msra.mxu0 %v1405
        %1449 = vmatprep.subr.bf16.mxu0 %v1404
        %1450 = vmatpush1.bf16.msra.mxu0 %v1403
        %1451 = vmatprep.subr.bf16.mxu0 0
        %1452 = vmatpush2.bf16.msra.mxu0 0
        %1453 = vmatprep.subr.bf16.mxu0 0
        %1454 = vmatpush2.bf16.msra.mxu0 0
        %1455 = vmatprep.subr.bf16.mxu0 0
        %1456 = vmatpush2.bf16.msra.mxu0 0
        %1457 = vmatprep.subr.bf16.mxu0 0
        %1458 = vmatpush2.bf16.msra.mxu0 0
        %1459 = vmatprep.subr.bf16.mxu0 0
        %1460 = vmatpush2.bf16.msra.mxu0 0
        %1461 = vmatprep.subr.bf16.mxu0 0
        %1462 = vmatpush2.bf16.msra.mxu0 0
        %1463 = vmatprep.subr.bf16.mxu0 0
        %1464 = vmatpush2.bf16.msra.mxu0 0
        %1465 = vmatprep.subr.bf16.mxu0 0
        %1466 = vmatpush2.bf16.msra.mxu0 0
        %1467 = vmatprep.mubr.bf16.mxu0 0
        %1468 = vmatmul.mubr.bf16.gmra.mxu0 %v1312
        %v1469 = vpop.f32.mrf.mxu0
        %v1470 = vadd.f32 %v1348, %v1469
        %v1471 = vpop.f32.mrf.mxu0
        %v1472 = vadd.f32 %v1352, %v1471
        %v1473 = vpop.f32.mrf.mxu0
        %v1474 = vadd.f32 %v1348, %v1473
        %v1475 = vpop.f32.mrf.mxu0
        %v1476 = vadd.f32 %v1352, %v1475
        %1477 = vmatprep.mubr.bf16.mxu0 0
        %1478 = vmatmul.mubr.bf16.gmra.mxu0 %v1313
        %v1479 = vpop.f32.mrf.mxu0
        %v1480 = vadd.f32 %v1348, %v1479
        %v1481 = vpop.f32.mrf.mxu0
        %v1482 = vadd.f32 %v1352, %v1481
        %v1483 = vpop.f32.mrf.mxu0
        %v1484 = vadd.f32 %v1348, %v1483
        %v1485 = vpop.f32.mrf.mxu0
        %v1486 = vadd.f32 %v1352, %v1485
        %1487 = vmatprep.mubr.bf16.mxu0 0
        %1488 = vmatmul.mubr.bf16.gmra.mxu0 %v1314
        %v1489 = vpop.f32.mrf.mxu0
        %v1490 = vadd.f32 %v1348, %v1489
        %v1491 = vpop.f32.mrf.mxu0
        %v1492 = vadd.f32 %v1352, %v1491
        %v1493 = vpop.f32.mrf.mxu0
        %v1494 = vadd.f32 %v1348, %v1493
        %v1495 = vpop.f32.mrf.mxu0
        %v1496 = vadd.f32 %v1352, %v1495
        %1497 = vmatprep.mubr.bf16.mxu0 0
        %1498 = vmatmul.mubr.bf16.gmra.mxu0 %v1315
        %v1499 = vpop.f32.mrf.mxu0
        %v1500 = vadd.f32 %v1348, %v1499
        %v1501 = vpop.f32.mrf.mxu0
        %v1502 = vadd.f32 %v1352, %v1501
        %v1503 = vpop.f32.mrf.mxu0
        %v1504 = vadd.f32 %v1348, %v1503
        %v1505 = vpop.f32.mrf.mxu0
        %v1506 = vadd.f32 %v1352, %v1505
        %1507 = vmatprep.mubr.bf16.mxu0 0
        %1508 = vmatmul.mubr.bf16.gmra.mxu0 %v1316
        %v1509 = vpop.f32.mrf.mxu0
        %v1510 = vadd.f32 %v1348, %v1509
        %v1511 = vpop.f32.mrf.mxu0
        %v1512 = vadd.f32 %v1352, %v1511
        %v1513 = vpop.f32.mrf.mxu0
        %v1514 = vadd.f32 %v1348, %v1513
        %v1515 = vpop.f32.mrf.mxu0
        %v1516 = vadd.f32 %v1352, %v1515
        %1517 = vmatprep.mubr.bf16.mxu0 0
        %1518 = vmatmul.mubr.bf16.gmra.mxu0 %v1317
        %v1519 = vpop.f32.mrf.mxu0
        %v1520 = vadd.f32 %v1348, %v1519
        %v1521 = vpop.f32.mrf.mxu0
        %v1522 = vadd.f32 %v1352, %v1521
        %v1523 = vpop.f32.mrf.mxu0
        %v1524 = vadd.f32 %v1348, %v1523
        %v1525 = vpop.f32.mrf.mxu0
        %v1526 = vadd.f32 %v1352, %v1525
        %1527 = vmatprep.mubr.bf16.mxu0 0
        %1528 = vmatmul.mubr.bf16.gmra.mxu0 %v1318
        %v1529 = vpop.f32.mrf.mxu0
        %v1530 = vadd.f32 %v1348, %v1529
        %v1531 = vpop.f32.mrf.mxu0
        %v1532 = vadd.f32 %v1352, %v1531
        %v1533 = vpop.f32.mrf.mxu0
        %v1534 = vadd.f32 %v1348, %v1533
        %v1535 = vpop.f32.mrf.mxu0
        %v1536 = vadd.f32 %v1352, %v1535
        %1537 = vmatprep.mubr.bf16.mxu0 0
        %1538 = vmatmul.mubr.bf16.gmra.mxu0 %v1319
        %v1539 = vpop.f32.mrf.mxu0
        %v1540 = vadd.f32 %v1348, %v1539
        %v1541 = vpop.f32.mrf.mxu0
        %v1542 = vadd.f32 %v1352, %v1541
        %v1543 = vpop.f32.mrf.mxu0
        %v1544 = vadd.f32 %v1348, %v1543
        %v1545 = vpop.f32.mrf.mxu0
        %v1546 = vadd.f32 %v1352, %v1545
        %1547 = vmatprep.mubr.bf16.mxu0 0
        %1548 = vmatmul.mubr.bf16.gmra.mxu0 %v1320
        %v1549 = vpop.f32.mrf.mxu0
        %v1550 = vadd.f32 %v1348, %v1549
        %v1551 = vpop.f32.mrf.mxu0
        %v1552 = vadd.f32 %v1352, %v1551
        %v1553 = vpop.f32.mrf.mxu0
        %v1554 = vadd.f32 %v1348, %v1553
        %v1555 = vpop.f32.mrf.mxu0
        %v1556 = vadd.f32 %v1352, %v1555
        %1557 = vmatprep.mubr.bf16.mxu0 0
        %1558 = vmatmul.mubr.bf16.gmra.mxu0 %v1321
        %v1559 = vpop.f32.mrf.mxu0
        %v1560 = vadd.f32 %v1348, %v1559
        %v1561 = vpop.f32.mrf.mxu0
        %v1562 = vadd.f32 %v1352, %v1561
        %v1563 = vpop.f32.mrf.mxu0
        %v1564 = vadd.f32 %v1348, %v1563
        %v1565 = vpop.f32.mrf.mxu0
        %v1566 = vadd.f32 %v1352, %v1565
        %1567 = vmatprep.mubr.bf16.mxu0 0
        %1568 = vmatmul.mubr.bf16.gmra.mxu0 %v1322
        %v1569 = vpop.f32.mrf.mxu0
        %v1570 = vadd.f32 %v1348, %v1569
        %v1571 = vpop.f32.mrf.mxu0
        %v1572 = vadd.f32 %v1352, %v1571
        %v1573 = vpop.f32.mrf.mxu0
        %v1574 = vadd.f32 %v1348, %v1573
        %v1575 = vpop.f32.mrf.mxu0
        %v1576 = vadd.f32 %v1352, %v1575
        %1577 = vmatprep.mubr.bf16.mxu0 0
        %1578 = vmatmul.mubr.bf16.gmra.mxu0 %v1323
        %v1579 = vpop.f32.mrf.mxu0
        %v1580 = vadd.f32 %v1348, %v1579
        %v1581 = vpop.f32.mrf.mxu0
        %v1582 = vadd.f32 %v1352, %v1581
        %v1583 = vpop.f32.mrf.mxu0
        %v1584 = vadd.f32 %v1348, %v1583
        %v1585 = vpop.f32.mrf.mxu0
        %v1586 = vadd.f32 %v1352, %v1585
        %1587 = vmatprep.mubr.bf16.mxu0 0
        %1588 = vmatmul.mubr.bf16.gmra.mxu0 %v1324
        %v1589 = vpop.f32.mrf.mxu0
        %v1590 = vadd.f32 %v1348, %v1589
        %v1591 = vpop.f32.mrf.mxu0
        %v1592 = vadd.f32 %v1352, %v1591
        %v1593 = vpop.f32.mrf.mxu0
        %v1594 = vadd.f32 %v1348, %v1593
        %v1595 = vpop.f32.mrf.mxu0
        %v1596 = vadd.f32 %v1352, %v1595
        %1597 = vmatprep.mubr.bf16.mxu0 0
        %1598 = vmatmul.mubr.bf16.gmra.mxu0 %v1325
        %v1599 = vpop.f32.mrf.mxu0
        %v1600 = vadd.f32 %v1348, %v1599
        %v1601 = vpop.f32.mrf.mxu0
        %v1602 = vadd.f32 %v1352, %v1601
        %v1603 = vpop.f32.mrf.mxu0
        %v1604 = vadd.f32 %v1348, %v1603
        %v1605 = vpop.f32.mrf.mxu0
        %v1606 = vadd.f32 %v1352, %v1605
        %1607 = vmatprep.mubr.bf16.mxu0 0
        %1608 = vmatmul.mubr.bf16.gmra.mxu0 %v1326
        %v1609 = vpop.f32.mrf.mxu0
        %v1610 = vadd.f32 %v1348, %v1609
        %v1611 = vpop.f32.mrf.mxu0
        %v1612 = vadd.f32 %v1352, %v1611
        %v1613 = vpop.f32.mrf.mxu0
        %v1614 = vadd.f32 %v1348, %v1613
        %v1615 = vpop.f32.mrf.mxu0
        %v1616 = vadd.f32 %v1352, %v1615
        %1617 = vmatprep.mubr.bf16.mxu0 0
        %1618 = vmatmul.mubr.bf16.gmra.mxu0 %v1327
        %v1619 = vpop.f32.mrf.mxu0
        %v1620 = vadd.f32 %v1348, %v1619
        %v1621 = vpop.f32.mrf.mxu0
        %v1622 = vadd.f32 %v1352, %v1621
        %v1623 = vpop.f32.mrf.mxu0
        %v1624 = vadd.f32 %v1348, %v1623
        %v1625 = vpop.f32.mrf.mxu0
        %v1626 = vadd.f32 %v1352, %v1625
        %1627 = vdwg.mxu0
        %v1628 = vxor.u32 %v1470, 2147483648
        %v1629 = vxor.u32 %v1472, 2147483648
        %v1630 = vxor.u32 %v1474, 2147483648
        %v1631 = vxor.u32 %v1476, 2147483648
        %v1632 = vxor.u32 %v1480, 2147483648
        %v1633 = vxor.u32 %v1482, 2147483648
        %v1634 = vxor.u32 %v1484, 2147483648
        %v1635 = vxor.u32 %v1486, 2147483648
        %v1636 = vxor.u32 %v1490, 2147483648
        %v1637 = vxor.u32 %v1492, 2147483648
        %v1638 = vxor.u32 %v1494, 2147483648
        %v1639 = vxor.u32 %v1496, 2147483648
        %v1640 = vxor.u32 %v1500, 2147483648
        %v1641 = vxor.u32 %v1502, 2147483648
        %v1642 = vxor.u32 %v1504, 2147483648
        %v1643 = vxor.u32 %v1506, 2147483648
        %v1644 = vxor.u32 %v1510, 2147483648
        %v1645 = vxor.u32 %v1512, 2147483648
        %v1646 = vxor.u32 %v1514, 2147483648
        %v1647 = vxor.u32 %v1516, 2147483648
        %v1648 = vxor.u32 %v1520, 2147483648
        %v1649 = vxor.u32 %v1522, 2147483648
        %v1650 = vxor.u32 %v1524, 2147483648
        %v1651 = vxor.u32 %v1526, 2147483648
        %v1652 = vxor.u32 %v1530, 2147483648
        %v1653 = vxor.u32 %v1532, 2147483648
        %v1654 = vxor.u32 %v1534, 2147483648
        %v1655 = vxor.u32 %v1536, 2147483648
        %v1656 = vxor.u32 %v1540, 2147483648
        %v1657 = vxor.u32 %v1542, 2147483648
        %v1658 = vxor.u32 %v1544, 2147483648
        %v1659 = vxor.u32 %v1546, 2147483648
        %v1660 = vxor.u32 %v1550, 2147483648
        %v1661 = vxor.u32 %v1552, 2147483648
        %v1662 = vxor.u32 %v1554, 2147483648
        %v1663 = vxor.u32 %v1556, 2147483648
        %v1664 = vxor.u32 %v1560, 2147483648
        %v1665 = vxor.u32 %v1562, 2147483648
        %v1666 = vxor.u32 %v1564, 2147483648
        %v1667 = vxor.u32 %v1566, 2147483648
        %v1668 = vxor.u32 %v1570, 2147483648
        %v1669 = vxor.u32 %v1572, 2147483648
        %v1670 = vxor.u32 %v1574, 2147483648
        %v1671 = vxor.u32 %v1576, 2147483648
        %v1672 = vxor.u32 %v1580, 2147483648
        %v1673 = vxor.u32 %v1582, 2147483648
        %v1674 = vxor.u32 %v1584, 2147483648
        %v1675 = vxor.u32 %v1586, 2147483648
        %v1676 = vxor.u32 %v1590, 2147483648
        %v1677 = vxor.u32 %v1592, 2147483648
        %v1678 = vxor.u32 %v1594, 2147483648
        %v1679 = vxor.u32 %v1596, 2147483648
        %v1680 = vxor.u32 %v1600, 2147483648
        %v1681 = vxor.u32 %v1602, 2147483648
        %v1682 = vxor.u32 %v1604, 2147483648
        %v1683 = vxor.u32 %v1606, 2147483648
        %v1684 = vxor.u32 %v1610, 2147483648
        %v1685 = vxor.u32 %v1612, 2147483648
        %v1686 = vxor.u32 %v1614, 2147483648
        %v1687 = vxor.u32 %v1616, 2147483648
        %v1688 = vxor.u32 %v1620, 2147483648
        %v1689 = vxor.u32 %v1622, 2147483648
        %v1690 = vxor.u32 %v1624, 2147483648
        %v1691 = vxor.u32 %v1626, 2147483648
        %v1692 = vmul.f32 %v1628, 1.442695
        %v1693 = vpow.pop %v1692
        %v1694 = vmul.f32 %v1629, 1.442695
        %v1695 = vpow.pop %v1694
        %v1696 = vmul.f32 %v1630, 1.442695
        %v1697 = vpow.pop %v1696
        %v1698 = vmul.f32 %v1631, 1.442695
        %v1699 = vpow.pop %v1698
        %v1700 = vmul.f32 %v1632, 1.442695
        %v1701 = vpow.pop %v1700
        %v1702 = vmul.f32 %v1633, 1.442695
        %v1703 = vpow.pop %v1702
        %v1704 = vmul.f32 %v1634, 1.442695
        %v1705 = vpow.pop %v1704
        %v1706 = vmul.f32 %v1635, 1.442695
        %v1707 = vpow.pop %v1706
        %v1708 = vmul.f32 %v1636, 1.442695
        %v1709 = vpow.pop %v1708
        %v1710 = vmul.f32 %v1637, 1.442695
        %v1711 = vpow.pop %v1710
        %v1712 = vmul.f32 %v1638, 1.442695
        %v1713 = vpow.pop %v1712
        %v1714 = vmul.f32 %v1639, 1.442695
        %v1715 = vpow.pop %v1714
        %v1716 = vmul.f32 %v1640, 1.442695
        %v1717 = vpow.pop %v1716
        %v1718 = vmul.f32 %v1641, 1.442695
        %v1719 = vpow.pop %v1718
        %v1720 = vmul.f32 %v1642, 1.442695
        %v1721 = vpow.pop %v1720
        %v1722 = vmul.f32 %v1643, 1.442695
        %v1723 = vpow.pop %v1722
        %v1724 = vmul.f32 %v1644, 1.442695
        %v1725 = vpow.pop %v1724
        %v1726 = vmul.f32 %v1645, 1.442695
        %v1727 = vpow.pop %v1726
        %v1728 = vmul.f32 %v1646, 1.442695
        %v1729 = vpow.pop %v1728
        %v1730 = vmul.f32 %v1647, 1.442695
        %v1731 = vpow.pop %v1730
        %v1732 = vmul.f32 %v1648, 1.442695
        %v1733 = vpow.pop %v1732
        %v1734 = vmul.f32 %v1649, 1.442695
        %v1735 = vpow.pop %v1734
        %v1736 = vmul.f32 %v1650, 1.442695
        %v1737 = vpow.pop %v1736
        %v1738 = vmul.f32 %v1651, 1.442695
        %v1739 = vpow.pop %v1738
        %v1740 = vmul.f32 %v1652, 1.442695
        %v1741 = vpow.pop %v1740
        %v1742 = vmul.f32 %v1653, 1.442695
        %v1743 = vpow.pop %v1742
        %v1744 = vmul.f32 %v1654, 1.442695
        %v1745 = vpow.pop %v1744
        %v1746 = vmul.f32 %v1655, 1.442695
        %v1747 = vpow.pop %v1746
        %v1748 = vmul.f32 %v1656, 1.442695
        %v1749 = vpow.pop %v1748
        %v1750 = vmul.f32 %v1657, 1.442695
        %v1751 = vpow.pop %v1750
        %v1752 = vmul.f32 %v1658, 1.442695
        %v1753 = vpow.pop %v1752
        %v1754 = vmul.f32 %v1659, 1.442695
        %v1755 = vpow.pop %v1754
        %v1756 = vmul.f32 %v1660, 1.442695
        %v1757 = vpow.pop %v1756
        %v1758 = vmul.f32 %v1661, 1.442695
        %v1759 = vpow.pop %v1758
        %v1760 = vmul.f32 %v1662, 1.442695
        %v1761 = vpow.pop %v1760
        %v1762 = vmul.f32 %v1663, 1.442695
        %v1763 = vpow.pop %v1762
        %v1764 = vmul.f32 %v1664, 1.442695
        %v1765 = vpow.pop %v1764
        %v1766 = vmul.f32 %v1665, 1.442695
        %v1767 = vpow.pop %v1766
        %v1768 = vmul.f32 %v1666, 1.442695
        %v1769 = vpow.pop %v1768
        %v1770 = vmul.f32 %v1667, 1.442695
        %v1771 = vpow.pop %v1770
        %v1772 = vmul.f32 %v1668, 1.442695
        %v1773 = vpow.pop %v1772
        %v1774 = vmul.f32 %v1669, 1.442695
        %v1775 = vpow.pop %v1774
        %v1776 = vmul.f32 %v1670, 1.442695
        %v1777 = vpow.pop %v1776
        %v1778 = vmul.f32 %v1671, 1.442695
        %v1779 = vpow.pop %v1778
        %v1780 = vmul.f32 %v1672, 1.442695
        %v1781 = vpow.pop %v1780
        %v1782 = vmul.f32 %v1673, 1.442695
        %v1783 = vpow.pop %v1782
        %v1784 = vmul.f32 %v1674, 1.442695
        %v1785 = vpow.pop %v1784
        %v1786 = vmul.f32 %v1675, 1.442695
        %v1787 = vpow.pop %v1786
        %v1788 = vmul.f32 %v1676, 1.442695
        %v1789 = vpow.pop %v1788
        %v1790 = vmul.f32 %v1677, 1.442695
        %v1791 = vpow.pop %v1790
        %v1792 = vmul.f32 %v1678, 1.442695
        %v1793 = vpow.pop %v1792
        %v1794 = vmul.f32 %v1679, 1.442695
        %v1795 = vpow.pop %v1794
        %v1796 = vmul.f32 %v1680, 1.442695
        %v1797 = vpow.pop %v1796
        %v1798 = vmul.f32 %v1681, 1.442695
        %v1799 = vpow.pop %v1798
        %v1800 = vmul.f32 %v1682, 1.442695
        %v1801 = vpow.pop %v1800
        %v1802 = vmul.f32 %v1683, 1.442695
        %v1803 = vpow.pop %v1802
        %v1804 = vmul.f32 %v1684, 1.442695
        %v1805 = vpow.pop %v1804
        %v1806 = vmul.f32 %v1685, 1.442695
        %v1807 = vpow.pop %v1806
        %v1808 = vmul.f32 %v1686, 1.442695
        %v1809 = vpow.pop %v1808
        %v1810 = vmul.f32 %v1687, 1.442695
        %v1811 = vpow.pop %v1810
        %v1812 = vmul.f32 %v1688, 1.442695
        %v1813 = vpow.pop %v1812
        %v1814 = vmul.f32 %v1689, 1.442695
        %v1815 = vpow.pop %v1814
        %v1816 = vmul.f32 %v1690, 1.442695
        %v1817 = vpow.pop %v1816
        %v1818 = vmul.f32 %v1691, 1.442695
        %v1819 = vpow.pop %v1818
        %v1820 = vadd.f32 %v1693, 1.0
        %v1821 = vadd.f32 %v1695, 1.0
        %v1822 = vadd.f32 %v1697, 1.0
        %v1823 = vadd.f32 %v1699, 1.0
        %v1824 = vadd.f32 %v1701, 1.0
        %v1825 = vadd.f32 %v1703, 1.0
        %v1826 = vadd.f32 %v1705, 1.0
        %v1827 = vadd.f32 %v1707, 1.0
        %v1828 = vadd.f32 %v1709, 1.0
        %v1829 = vadd.f32 %v1711, 1.0
        %v1830 = vadd.f32 %v1713, 1.0
        %v1831 = vadd.f32 %v1715, 1.0
        %v1832 = vadd.f32 %v1717, 1.0
        %v1833 = vadd.f32 %v1719, 1.0
        %v1834 = vadd.f32 %v1721, 1.0
        %v1835 = vadd.f32 %v1723, 1.0
        %v1836 = vadd.f32 %v1725, 1.0
        %v1837 = vadd.f32 %v1727, 1.0
        %v1838 = vadd.f32 %v1729, 1.0
        %v1839 = vadd.f32 %v1731, 1.0
        %v1840 = vadd.f32 %v1733, 1.0
        %v1841 = vadd.f32 %v1735, 1.0
        %v1842 = vadd.f32 %v1737, 1.0
        %v1843 = vadd.f32 %v1739, 1.0
        %v1844 = vadd.f32 %v1741, 1.0
        %v1845 = vadd.f32 %v1743, 1.0
        %v1846 = vadd.f32 %v1745, 1.0
        %v1847 = vadd.f32 %v1747, 1.0
        %v1848 = vadd.f32 %v1749, 1.0
        %v1849 = vadd.f32 %v1751, 1.0
        %v1850 = vadd.f32 %v1753, 1.0
        %v1851 = vadd.f32 %v1755, 1.0
        %v1852 = vadd.f32 %v1757, 1.0
        %v1853 = vadd.f32 %v1759, 1.0
        %v1854 = vadd.f32 %v1761, 1.0
        %v1855 = vadd.f32 %v1763, 1.0
        %v1856 = vadd.f32 %v1765, 1.0
        %v1857 = vadd.f32 %v1767, 1.0
        %v1858 = vadd.f32 %v1769, 1.0
        %v1859 = vadd.f32 %v1771, 1.0
        %v1860 = vadd.f32 %v1773, 1.0
        %v1861 = vadd.f32 %v1775, 1.0
        %v1862 = vadd.f32 %v1777, 1.0
        %v1863 = vadd.f32 %v1779, 1.0
        %v1864 = vadd.f32 %v1781, 1.0
        %v1865 = vadd.f32 %v1783, 1.0
        %v1866 = vadd.f32 %v1785, 1.0
        %v1867 = vadd.f32 %v1787, 1.0
        %v1868 = vadd.f32 %v1789, 1.0
        %v1869 = vadd.f32 %v1791, 1.0
        %v1870 = vadd.f32 %v1793, 1.0
        %v1871 = vadd.f32 %v1795, 1.0
        %v1872 = vadd.f32 %v1797, 1.0
        %v1873 = vadd.f32 %v1799, 1.0
        %v1874 = vadd.f32 %v1801, 1.0
        %v1875 = vadd.f32 %v1803, 1.0
        %v1876 = vadd.f32 %v1805, 1.0
        %v1877 = vadd.f32 %v1807, 1.0
        %v1878 = vadd.f32 %v1809, 1.0
        %v1879 = vadd.f32 %v1811, 1.0
        %v1880 = vadd.f32 %v1813, 1.0
        %v1881 = vadd.f32 %v1815, 1.0
        %v1882 = vadd.f32 %v1817, 1.0
        %v1883 = vadd.f32 %v1819, 1.0
        %v1884 = vrcp.pop %v1820
        %v1885 = vmul.f32 1.0, %v1884
        %v1886 = vrcp.pop %v1821
        %v1887 = vmul.f32 1.0, %v1886
        %v1888 = vrcp.pop %v1822
        %v1889 = vmul.f32 1.0, %v1888
        %v1890 = vrcp.pop %v1823
        %v1891 = vmul.f32 1.0, %v1890
        %v1892 = vrcp.pop %v1824
        %v1893 = vmul.f32 1.0, %v1892
        %v1894 = vrcp.pop %v1825
        %v1895 = vmul.f32 1.0, %v1894
        %v1896 = vrcp.pop %v1826
        %v1897 = vmul.f32 1.0, %v1896
        %v1898 = vrcp.pop %v1827
        %v1899 = vmul.f32 1.0, %v1898
        %v1900 = vrcp.pop %v1828
        %v1901 = vmul.f32 1.0, %v1900
        %v1902 = vrcp.pop %v1829
        %v1903 = vmul.f32 1.0, %v1902
        %v1904 = vrcp.pop %v1830
        %v1905 = vmul.f32 1.0, %v1904
        %v1906 = vrcp.pop %v1831
        %v1907 = vmul.f32 1.0, %v1906
        %v1908 = vrcp.pop %v1832
        %v1909 = vmul.f32 1.0, %v1908
        %v1910 = vrcp.pop %v1833
        %v1911 = vmul.f32 1.0, %v1910
        %v1912 = vrcp.pop %v1834
        %v1913 = vmul.f32 1.0, %v1912
        %v1914 = vrcp.pop %v1835
        %v1915 = vmul.f32 1.0, %v1914
        %v1916 = vrcp.pop %v1836
        %v1917 = vmul.f32 1.0, %v1916
        %v1918 = vrcp.pop %v1837
        %v1919 = vmul.f32 1.0, %v1918
        %v1920 = vrcp.pop %v1838
        %v1921 = vmul.f32 1.0, %v1920
        %v1922 = vrcp.pop %v1839
        %v1923 = vmul.f32 1.0, %v1922
        %v1924 = vrcp.pop %v1840
        %v1925 = vmul.f32 1.0, %v1924
        %v1926 = vrcp.pop %v1841
        %v1927 = vmul.f32 1.0, %v1926
        %v1928 = vrcp.pop %v1842
        %v1929 = vmul.f32 1.0, %v1928
        %v1930 = vrcp.pop %v1843
        %v1931 = vmul.f32 1.0, %v1930
        %v1932 = vrcp.pop %v1844
        %v1933 = vmul.f32 1.0, %v1932
        %v1934 = vrcp.pop %v1845
        %v1935 = vmul.f32 1.0, %v1934
        %v1936 = vrcp.pop %v1846
        %v1937 = vmul.f32 1.0, %v1936
        %v1938 = vrcp.pop %v1847
        %v1939 = vmul.f32 1.0, %v1938
        %v1940 = vrcp.pop %v1848
        %v1941 = vmul.f32 1.0, %v1940
        %v1942 = vrcp.pop %v1849
        %v1943 = vmul.f32 1.0, %v1942
        %v1944 = vrcp.pop %v1850
        %v1945 = vmul.f32 1.0, %v1944
        %v1946 = vrcp.pop %v1851
        %v1947 = vmul.f32 1.0, %v1946
        %v1948 = vrcp.pop %v1852
        %v1949 = vmul.f32 1.0, %v1948
        %v1950 = vrcp.pop %v1853
        %v1951 = vmul.f32 1.0, %v1950
        %v1952 = vrcp.pop %v1854
        %v1953 = vmul.f32 1.0, %v1952
        %v1954 = vrcp.pop %v1855
        %v1955 = vmul.f32 1.0, %v1954
        %v1956 = vrcp.pop %v1856
        %v1957 = vmul.f32 1.0, %v1956
        %v1958 = vrcp.pop %v1857
        %v1959 = vmul.f32 1.0, %v1958
        %v1960 = vrcp.pop %v1858
        %v1961 = vmul.f32 1.0, %v1960
        %v1962 = vrcp.pop %v1859
        %v1963 = vmul.f32 1.0, %v1962
        %v1964 = vrcp.pop %v1860
        %v1965 = vmul.f32 1.0, %v1964
        %v1966 = vrcp.pop %v1861
        %v1967 = vmul.f32 1.0, %v1966
        %v1968 = vrcp.pop %v1862
        %v1969 = vmul.f32 1.0, %v1968
        %v1970 = vrcp.pop %v1863
        %v1971 = vmul.f32 1.0, %v1970
        %v1972 = vrcp.pop %v1864
        %v1973 = vmul.f32 1.0, %v1972
        %v1974 = vrcp.pop %v1865
        %v1975 = vmul.f32 1.0, %v1974
        %v1976 = vrcp.pop %v1866
        %v1977 = vmul.f32 1.0, %v1976
        %v1978 = vrcp.pop %v1867
        %v1979 = vmul.f32 1.0, %v1978
        %v1980 = vrcp.pop %v1868
        %v1981 = vmul.f32 1.0, %v1980
        %v1982 = vrcp.pop %v1869
        %v1983 = vmul.f32 1.0, %v1982
        %v1984 = vrcp.pop %v1870
        %v1985 = vmul.f32 1.0, %v1984
        %v1986 = vrcp.pop %v1871
        %v1987 = vmul.f32 1.0, %v1986
        %v1988 = vrcp.pop %v1872
        %v1989 = vmul.f32 1.0, %v1988
        %v1990 = vrcp.pop %v1873
        %v1991 = vmul.f32 1.0, %v1990
        %v1992 = vrcp.pop %v1874
        %v1993 = vmul.f32 1.0, %v1992
        %v1994 = vrcp.pop %v1875
        %v1995 = vmul.f32 1.0, %v1994
        %v1996 = vrcp.pop %v1876
        %v1997 = vmul.f32 1.0, %v1996
        %v1998 = vrcp.pop %v1877
        %v1999 = vmul.f32 1.0, %v1998
        %v2000 = vrcp.pop %v1878
        %v2001 = vmul.f32 1.0, %v2000
        %v2002 = vrcp.pop %v1879
        %v2003 = vmul.f32 1.0, %v2002
        %v2004 = vrcp.pop %v1880
        %v2005 = vmul.f32 1.0, %v2004
        %v2006 = vrcp.pop %v1881
        %v2007 = vmul.f32 1.0, %v2006
        %v2008 = vrcp.pop %v1882
        %v2009 = vmul.f32 1.0, %v2008
        %v2010 = vrcp.pop %v1883
        %v2011 = vmul.f32 1.0, %v2010
        %2012 = vst [vmem:[%s328] sm:$0xff] %v1885
        %2013 = vst [vmem:[%s328 + $0x8] sm:$0xff] %v1887
        %2014 = vst [vmem:[%s328 + $0x10] sm:$0xff] %v1889
        %2015 = vst [vmem:[%s328 + $0x18] sm:$0xff] %v1891
        %2016 = vst [vmem:[%s328 + $0x20] sm:$0xff] %v1893
        %2017 = vst [vmem:[%s328 + $0x28] sm:$0xff] %v1895
        %2018 = vst [vmem:[%s328 + $0x30] sm:$0xff] %v1897
        %2019 = vst [vmem:[%s328 + $0x38] sm:$0xff] %v1899
        %2020 = vst [vmem:[%s328 + $0x40] sm:$0xff] %v1901
        %2021 = vst [vmem:[%s328 + $0x48] sm:$0xff] %v1903
        %2022 = vst [vmem:[%s328 + $0x50] sm:$0xff] %v1905
        %2023 = vst [vmem:[%s328 + $0x58] sm:$0xff] %v1907
        %2024 = vst [vmem:[%s328 + $0x60] sm:$0xff] %v1909
        %2025 = vst [vmem:[%s328 + $0x68] sm:$0xff] %v1911
        %2026 = vst [vmem:[%s328 + $0x70] sm:$0xff] %v1913
        %2027 = vst [vmem:[%s328 + $0x78] sm:$0xff] %v1915
        %2028 = vst [vmem:[%s328 + $0x80] sm:$0xff] %v1917
        %2029 = vst [vmem:[%s328 + $0x88] sm:$0xff] %v1919
        %2030 = vst [vmem:[%s328 + $0x90] sm:$0xff] %v1921
        %2031 = vst [vmem:[%s328 + $0x98] sm:$0xff] %v1923
        %2032 = vst [vmem:[%s328 + $0xa0] sm:$0xff] %v1925
        %2033 = vst [vmem:[%s328 + $0xa8] sm:$0xff] %v1927
        %2034 = vst [vmem:[%s328 + $0xb0] sm:$0xff] %v1929
        %2035 = vst [vmem:[%s328 + $0xb8] sm:$0xff] %v1931
        %2036 = vst [vmem:[%s328 + $0xc0] sm:$0xff] %v1933
        %2037 = vst [vmem:[%s328 + $0xc8] sm:$0xff] %v1935
        %2038 = vst [vmem:[%s328 + $0xd0] sm:$0xff] %v1937
        %2039 = vst [vmem:[%s328 + $0xd8] sm:$0xff] %v1939
        %2040 = vst [vmem:[%s328 + $0xe0] sm:$0xff] %v1941
        %2041 = vst [vmem:[%s328 + $0xe8] sm:$0xff] %v1943
        %2042 = vst [vmem:[%s328 + $0xf0] sm:$0xff] %v1945
        %2043 = vst [vmem:[%s328 + $0xf8] sm:$0xff] %v1947
        %2044 = vst [vmem:[%s328 + $0x100] sm:$0xff] %v1949
        %2045 = vst [vmem:[%s328 + $0x108] sm:$0xff] %v1951
        %2046 = vst [vmem:[%s328 + $0x110] sm:$0xff] %v1953
        %2047 = vst [vmem:[%s328 + $0x118] sm:$0xff] %v1955
        %2048 = vst [vmem:[%s328 + $0x120] sm:$0xff] %v1957
        %2049 = vst [vmem:[%s328 + $0x128] sm:$0xff] %v1959
        %2050 = vst [vmem:[%s328 + $0x130] sm:$0xff] %v1961
        %2051 = vst [vmem:[%s328 + $0x138] sm:$0xff] %v1963
        %2052 = vst [vmem:[%s328 + $0x140] sm:$0xff] %v1965
        %2053 = vst [vmem:[%s328 + $0x148] sm:$0xff] %v1967
        %2054 = vst [vmem:[%s328 + $0x150] sm:$0xff] %v1969
        %2055 = vst [vmem:[%s328 + $0x158] sm:$0xff] %v1971
        %2056 = vst [vmem:[%s328 + $0x160] sm:$0xff] %v1973
        %2057 = vst [vmem:[%s328 + $0x168] sm:$0xff] %v1975
        %2058 = vst [vmem:[%s328 + $0x170] sm:$0xff] %v1977
        %2059 = vst [vmem:[%s328 + $0x178] sm:$0xff] %v1979
        %2060 = vst [vmem:[%s328 + $0x180] sm:$0xff] %v1981
        %2061 = vst [vmem:[%s328 + $0x188] sm:$0xff] %v1983
        %2062 = vst [vmem:[%s328 + $0x190] sm:$0xff] %v1985
        %2063 = vst [vmem:[%s328 + $0x198] sm:$0xff] %v1987
        %2064 = vst [vmem:[%s328 + $0x1a0] sm:$0xff] %v1989
        %2065 = vst [vmem:[%s328 + $0x1a8] sm:$0xff] %v1991
        %2066 = vst [vmem:[%s328 + $0x1b0] sm:$0xff] %v1993
        %2067 = vst [vmem:[%s328 + $0x1b8] sm:$0xff] %v1995
        %2068 = vst [vmem:[%s328 + $0x1c0] sm:$0xff] %v1997
        %2069 = vst [vmem:[%s328 + $0x1c8] sm:$0xff] %v1999
        %2070 = vst [vmem:[%s328 + $0x1d0] sm:$0xff] %v2001
        %2071 = vst [vmem:[%s328 + $0x1d8] sm:$0xff] %v2003
        %2072 = vst [vmem:[%s328 + $0x1e0] sm:$0xff] %v2005
        %2073 = vst [vmem:[%s328 + $0x1e8] sm:$0xff] %v2007
        %2074 = vst [vmem:[%s328 + $0x1f0] sm:$0xff] %v2009
        %2075 = vst [vmem:[%s328 + $0x1f8] sm:$0xff] %v2011
        %s2076 = sand.u32 %s164, 1
        %s2077 = scalar_lea.sflag [#allocation4], %s2076
        %s2078 = sand.u32 %s164, 1
        %s2079 = smul.addr %s2078, 512
        %s2080 = scalar_lea.vmem [#allocation11], %s2079
        // Predicated region
        $region65: #{tpu_custom_call.1} parent=43 // pred_check
          %p2081 = pneg %p174
        $region66: #{tpu_custom_call.1} parent=43 // pred_check_branch
          %2083 = sbr.rel (%p2081) target = $region68
        $region67: #{tpu_custom_call.1} parent=43 // pred_region
          %s2084 = smul.u32 32, %s25
          %s2086 = ssub.s32 8192, 8192
          %2087 = vsyncadd %s2077, %s2086
          %s2088 = smul.addr %s2084, 2
          %s2089 = smul.addr %s2088, 128
          %s2090 = scalar_lea.hbm %s6, %s2089
          %s2091 = sshll.u32 %s2080, 4
          %s2092 = int_to_ptr.vmem [resolvable:$true] %s2091
          %2097 = dma.vmem_to_hbm [thread:$0]  %s2092, 8192, %s2090, %s2077, 256, 256, 16
        $region68: #{tpu_custom_call.1} parent=43 // pred_fallthru
          _
      $region44: #{tpu_custom_call.1} parent=5 // pred_fallthru
        _
      %p2098 = scmp.le.s32.totalorder 2, %s20
      // Predicated region
      $region69: #{tpu_custom_call.1} parent=5 // pred_check
        %p2099 = pneg %p2098
      $region70: #{tpu_custom_call.1} parent=5 // pred_check_branch
        %2101 = sbr.rel (%p2099) target = $region72
      $region71: #{tpu_custom_call.1} parent=5 // pred_region
        %s2102 = ssub.s32 %s20, 2
        // Predicated region
        $region73: #{tpu_custom_call.1} parent=71 // pred_check
          %p2103 = pneg %p180
        $region74: #{tpu_custom_call.1} parent=71 // pred_check_branch
          %2105 = sbr.rel (%p2103) target = $region76
        $region75: #{tpu_custom_call.1} parent=71 // pred_region
          %s2106 = sand.u32 %s165, 1
          %s2107 = scalar_lea.sflag [#allocation4], %s2106
          %s2108 = sand.u32 %s165, 1
          %s2109 = smul.addr %s2108, 512
          %s2110 = scalar_lea.vmem [#allocation11], %s2109
          %2111 = dma.done %s2107, 8192
        $region76: #{tpu_custom_call.1} parent=71 // pred_fallthru
          _
      $region72: #{tpu_custom_call.1} parent=5 // pred_fallthru
        _
    $region6: #{tpu_custom_call.1} parent=1 // loop_footer
      %s24 = sadd.s32 1, %s20
    $region7: #{tpu_custom_call.1} parent=1 // loop_footer_branch
      %19 = sbr.rel target = $region3
    $region8: #{tpu_custom_call.1} parent=1 // loop_exit
      _
    %2112 = vsyncpa [#allocation3], 1
    %s2113 = scalar_lea.sflag [#allocation3], 1
    %2114 = vsyncpa %s2113, 1
    %2115 = vsyncpa [#allocation6], 1
    %2116 = vsyncpa [#allocation9], 1
    %2117 = vsyncpa [#allocation4], 1
    %s2118 = scalar_lea.sflag [#allocation4], 1
    %2119 = vsyncpa %s2118, 1

</llo_original>
